<compile_context>
chip_gen: v5e
topology: v5e:2x2
jax: 0.10.0
libtpu: 0.0.40
codegen_flags: <defaults>
</compile_context>

<pallas_src>
import math
import numpy as np
import jax
import jax.numpy as jnp
from jax import lax
from jax.experimental import pallas as pl
from jax.experimental.pallas import tpu as pltpu

# -------------------- configuration (matches module __init__) --------------------
ANCHORS = [(116, 90), (156, 198), (373, 326),
           (30, 61), (62, 45), (59, 119),
           (10, 13), (16, 30), (33, 23)]          # 9 anchors (pixels)
ANGLES = [-math.pi / 3, -math.pi / 6, 0.0, math.pi / 6, math.pi / 3, math.pi / 2]
NUM_CLASSES = 2                                    # class-BCE not used by reference forward
IMG_SIZE = (128, 128)
BBOX_ATTRS = 6
NA3 = len(ANCHORS) // 3        # anchors per scale = 3
NANG = len(ANGLES)             # 6
AA = NA3 * NANG                # anchor*angle rows per position block = 18
LANE = 128
NF_F = 6                       # float GT fields shipped to kernel: gx gy gw gh cos(gs) sin(gs)


# -------------------- host-side get_target (glue; assignment + tables) -----------
def build_gt_tables(targets, scaled_anchors_all, angles, in_w, in_h,
                    anchor_index, subtract_index, t_max):
    """Replicates get_target's scalar assignment on host; emits
       - kernel tables: gtf (f32 flat), gti (int32 flat: [nt per image, tgt_lin per GT])
       - wrapper tables for the sparse per-GT loc / positive-focal terms."""
    bs = len(targets)
    hw = in_h * in_w
    aw_all = np.array([a[0] for a in scaled_anchors_all], np.float32)
    ah_all = np.array([a[1] for a in scaled_anchors_all], np.float32)
    angles_np = np.asarray(angles, np.float32)

    gtf = np.zeros((bs, t_max, NF_F), np.float32)
    nt = np.zeros((bs,), np.int32)
    tgt_lin = np.full((bs, t_max), -1, np.int32)

    asn = np.zeros((bs, t_max), np.float32)     # last-writer-wins assignment flag
    row = np.zeros((bs, t_max), np.int32)       # bn*NANG + angle_n
    col = np.zeros((bs, t_max), np.int32)       # gj*in_w + gi
    tbox = np.zeros((bs, t_max, 5), np.float32)
    bls = np.ones((bs, t_max), np.float32)      # 2 - blsx*blsy
    anc_w = np.ones((bs, t_max), np.float32)
    anc_h = np.ones((bs, t_max), np.float32)
    ang = np.zeros((bs, t_max), np.float32)
    gi_f = np.zeros((bs, t_max), np.float32)
    gj_f = np.zeros((bs, t_max), np.float32)

    for b in range(bs):
        tb = np.asarray(targets[b], np.float32)
        n = min(int(tb.shape[0]), t_max)
        nt[b] = n
        last = {}
        for t in range(n):
            gx = float(tb[t, 0]) * in_w
            gy = float(tb[t, 1]) * in_h
            gw = float(tb[t, 2]) * in_w
            gh = float(tb[t, 3]) * in_h
            gs = float(tb[t, 4])
            gtf[b, t] = [gx, gy, gw, gh, math.cos(gs), math.sin(gs)]
            gi, gj = int(gx), int(gy)
            angle_n = int(np.argmin(np.abs(gs - angles_np)))
            # TODO(synk): cv2.rotatedRectangleIntersection has no JAX equivalent;
            # anchor matching uses axis-aligned IoU of (w,h) rects at the origin.
            inter = np.minimum(gw, aw_all) * np.minimum(gh, ah_all)
            union = gw * gh + aw_all * ah_all - inter + 1e-16
            best_n = int(np.argmax(inter / union))
            if best_n in anchor_index and gj < in_h and gi < in_w:
                bn = best_n - subtract_index
                r = bn * NANG + angle_n
                c = gj * in_w + gi
                tgt_lin[b, t] = r * hw + c
                row[b, t] = r
                col[b, t] = c
                tbox[b, t] = [gx, gy, gw, gh, gs]
                bls[b, t] = 2.0 - float(tb[t, 2]) * float(tb[t, 3])
                anc_w[b, t] = aw_all[best_n]
                anc_h[b, t] = ah_all[best_n]
                ang[b, t] = angles_np[angle_n]
                gi_f[b, t] = float(gi)
                gj_f[b, t] = float(gj)
                last[(r, c)] = t            # dedup: torch scatter = last write wins
        for (_rc, t) in last.items():
            asn[b, t] = 1.0

    gti = np.concatenate([nt, tgt_lin.reshape(-1)]).astype(np.int32)
    return dict(gtf=gtf.reshape(-1), gti=gti, asn=asn, row=row, col=col, tbox=tbox,
                bls=bls, anc_w=anc_w, anc_h=anc_h, ang=ang, gi=gi_f, gj=gj_f)


# -------------------- Pallas kernel --------------------
def _make_kernel(bs, t_max, in_w, hw, rows, cols, anchors_wh, angles):
    n_anc = anchors_wh.shape[0]
    n_ang = len(angles)
    hw_pow2 = (hw & (hw - 1)) == 0
    w_pow2 = (in_w & (in_w - 1)) == 0
    hw_shift = hw.bit_length() - 1
    w_shift = in_w.bit_length() - 1

    def kernel(gtf_ref, gti_ref, x_ref, out_ref):
        b = pl.program_id(0)

        # ---- index / constant planes (transient; only `lin` stays live) ----
        lin = (lax.broadcasted_iota(jnp.int32, (rows, cols), 0) * cols
               + lax.broadcasted_iota(jnp.int32, (rows, cols), 1))
        if hw_pow2:
            r = jnp.right_shift(lin, hw_shift)
            sp = jnp.bitwise_and(lin, hw - 1)
        else:
            r = lin // hw
            sp = lin - r * hw
        if w_pow2:
            h_i = jnp.right_shift(sp, w_shift)
            w_i = jnp.bitwise_and(sp, in_w - 1)
        else:
            h_i = sp // in_w
            w_i = sp - h_i * in_w
        a_i = jnp.zeros_like(r)
        for k in range(1, n_anc):
            a_i = a_i + (r >= k * n_ang).astype(jnp.int32)
        ang_i = r - a_i * n_ang
        grid_x = w_i.astype(jnp.float32)
        grid_y = h_i.astype(jnp.float32)
        anc_w = jnp.full((rows, cols), float(anchors_wh[n_anc - 1, 0]), jnp.float32)
        anc_h = jnp.full((rows, cols), float(anchors_wh[n_anc - 1, 1]), jnp.float32)
        for k in range(n_anc - 1):
            sel = a_i == k
            anc_w = jnp.where(sel, float(anchors_wh[k, 0]), anc_w)
            anc_h = jnp.where(sel, float(anchors_wh[k, 1]), anc_h)
        anc_ang = jnp.full((rows, cols), float(angles[n_ang - 1]), jnp.float32)
        for k in range(n_ang - 1):
            anc_ang = jnp.where(ang_i == k, float(angles[k]), anc_ang)

        # ---- decode predictions (contiguous attr slices: wrapper transposed x) ----
        px = jax.nn.sigmoid(x_ref[0]) + grid_x
        py = jax.nn.sigmoid(x_ref[1]) + grid_y
        pw = jnp.exp(x_ref[2]) * anc_w
        ph = jnp.exp(x_ref[3]) * anc_h
        psita = x_ref[4] + anc_ang
        b1x1 = px - 0.5 * pw
        b1x2 = px + 0.5 * pw
        b1y1 = py - 0.5 * ph
        b1y2 = py + 0.5 * ph
        area_p = pw * ph
        cosp = jnp.cos(psita)
        sinp = jnp.sin(psita)

        nt = gti_ref[b]                     # actual GT count for this image
        lin_base = bs + b * t_max
        f_base = b * (t_max * NF_F)

        # ---- per-GT loop: AR-jaccard ignore + obj-cell exclusion (fori, real count) ----
        def gt_body(t, keep):
            fo = f_base + t * NF_F
            gx = gtf_ref[fo + 0]
            gy = gtf_ref[fo + 1]
            gw = gtf_ref[fo + 2]
            gh = gtf_ref[fo + 3]
            cgs = gtf_ref[fo + 4]
            sgs = gtf_ref[fo + 5]
            tgt = gti_ref[lin_base + t]      # linear obj cell index, -1 if unassigned

            gx1 = gx - 0.5 * gw
            gx2 = gx + 0.5 * gw
            gy1 = gy - 0.5 * gh
            gy2 = gy + 0.5 * gh
            iw = jnp.maximum(jnp.minimum(b1x2, gx2) - jnp.maximum(b1x1, gx1), 0.0)
            ih = jnp.maximum(jnp.minimum(b1y2, gy2) - jnp.maximum(b1y1, gy1), 0.0)
            inter = iw * ih
            union = area_p - inter + (gw * gh)
            # |cos(gs - psita)| = |cos(gs)cos(psita) + sin(gs)sin(psita)|, hoisted to FMAs
            angf = jnp.abs(cgs * cosp + sgs * sinp)
            # cross-multiplied AR-jaccard test (union >= 0, angf >= 0): no dense divide
            ignore = inter * angf > 0.3 * union
            hit = lin == tgt                 # single linear-index obj-cell test
            return jnp.where(ignore | hit, 0.0, keep)

        keep = lax.fori_loop(0, nt, gt_body, jnp.ones((rows, cols), jnp.float32))

        # ---- dense "no-object" focal confidence term:  -0.05 * conf * log(1-conf) ----
        eps = 1e-7
        pc = jnp.clip(jax.nn.sigmoid(x_ref[5]), eps, 1.0 - eps)
        neg = (-0.05) * pc * jnp.log(1.0 - pc)
        conf_neg = jnp.sum(neg * keep)

        # single unmasked lane-dense store of the per-image partial
        out_ref[...] = jnp.zeros((8, LANE), jnp.float32) + conf_neg

    return kernel


# -------------------- sparse per-GT terms (<= t_max cells / image, JAX wrapper) ----
def _per_gt_terms(x, tab, bs, t_max, hw):
    # gather raw prediction attrs at each assigned (anchor, angle, cell)
    flat = jnp.reshape(x, (bs, -1))                                  # channel-major (AA,6,hw)
    attr = np.arange(BBOX_ATTRS, dtype=np.int64)
    gidx = (tab["row"][..., None].astype(np.int64) * (BBOX_ATTRS * hw)
            + attr[None, None, :] * hw
            + tab["col"][..., None].astype(np.int64))                # (bs, t_max, 6)
    g = jnp.take_along_axis(flat, jnp.asarray(gidx.reshape(bs, -1), dtype=jnp.int32), axis=1)
    g = jnp.reshape(g, (bs, t_max, BBOX_ATTRS))

    px = jax.nn.sigmoid(g[..., 0]) + tab["gi"]
    py = jax.nn.sigmoid(g[..., 1]) + tab["gj"]
    pw = jnp.exp(g[..., 2]) * tab["anc_w"]
    ph = jnp.exp(g[..., 3]) * tab["anc_h"]
    ps = g[..., 4] + tab["ang"]
    pconf = jax.nn.sigmoid(g[..., 5])

    tx = tab["tbox"][..., 0]
    ty = tab["tbox"][..., 1]
    tw = tab["tbox"][..., 2]
    th = tab["tbox"][..., 3]
    ts = tab["tbox"][..., 4]

    # box_ciou_angel_skewiou (reference math; exact divides on tiny arrays)
    b1x1 = px - pw * 0.5
    b1x2 = px + pw * 0.5
    b1y1 = py - ph * 0.5
    b1y2 = py + ph * 0.5
    b2x1 = tx - tw * 0.5
    b2x2 = tx + tw * 0.5
    b2y1 = ty - th * 0.5
    b2y2 = ty + th * 0.5
    iw = jnp.maximum(jnp.minimum(b1x2, b2x2) - jnp.maximum(b1x1, b2x1), 0.0)
    ih = jnp.maximum(jnp.minimum(b1y2, b2y2) - jnp.maximum(b1y1, b2y1), 0.0)
    inter = iw * ih
    union = pw * ph + tw * th - inter
    iou = inter / jnp.maximum(union, 1e-6)
    center_d = (px - tx) ** 2 + (py - ty) ** 2
    ew = jnp.maximum(jnp.maximum(b1x2, b2x2) - jnp.minimum(b1x1, b2x1), 0.0)
    eh = jnp.maximum(jnp.maximum(b1y2, b2y2) - jnp.minimum(b1y1, b2y1), 0.0)
    diag = ew * ew + eh * eh
    ciou = iou - center_d / jnp.maximum(diag, 1e-6)
    v = (4.0 / (math.pi ** 2)) * (jnp.arctan(pw / jnp.maximum(ph, 1e-6))
                                  - jnp.arctan(tw / jnp.maximum(th, 1e-6))) ** 2
    alpha = v / jnp.maximum(1.0 - iou + v, 1e-6)
    ciou = ciou - alpha * v
    ciou_term = (1.0 - ciou) * tab["bls"]
    sig2 = 9.0
    rd = jnp.abs(ps - ts)          # reference does not wrap the angle difference
    reg = jnp.where(rd <= 1.0 / sig2, 0.5 * sig2 * rd * rd, rd - 0.5 / sig2)

    asn = tab["asn"]
    loc_sum = jnp.sum((ciou_term + reg) * asn)

    eps = 1e-7
    pc = jnp.clip(pconf, eps, 1.0 - eps)
    conf_pos = jnp.sum(-0.95 * (1.0 - pc) * jnp.log(pc) * asn)
    return loc_sum, conf_pos


# -------------------- wrapper --------------------
def yolo_loss(x, targets):
    x = jnp.asarray(x, jnp.float32)
    bs, c, in_h, in_w = x.shape
    assert c == AA * BBOX_ATTRS and in_h == in_w
    hw = in_h * in_w

    stride_h = IMG_SIZE[1] / in_h
    stride_w = IMG_SIZE[0] / in_w
    scaled_anchors = [(aw / stride_w, ah / stride_h) for aw, ah in ANCHORS]
    feature_length = [IMG_SIZE[0] // 32, IMG_SIZE[0] // 16, IMG_SIZE[0] // 8]
    fidx = feature_length.index(in_w)
    anchor_index = [[0, 1, 2], [3, 4, 5], [6, 7, 8]][fidx]
    subtract_index = [0, 3, 6][fidx]
    sa_all = np.array(scaled_anchors, np.float32)
    sa_local = sa_all[anchor_index]                            # (3, 2)

    t_max = max(1, max(int(np.asarray(t).shape[0]) for t in targets))
    tab = build_gt_tables(targets, sa_all, ANGLES, in_w, in_h,
                          anchor_index, subtract_index, t_max)

    # lane-dense layout: (bs, 6, AA*hw/128, 128) -- contiguous attr slices,
    # 36->40 sublane padding instead of 18->24.  (HBM-side transpose, ~110 KiB/img.)
    cols = LANE if (AA * hw) % LANE == 0 else hw
    rows = (AA * hw) // cols
    xr = jnp.transpose(jnp.reshape(x, (bs, AA, BBOX_ATTRS, hw)), (0, 2, 1, 3))
    xr = jnp.reshape(xr, (bs, BBOX_ATTRS, rows, cols))

    kernel = _make_kernel(bs, t_max, in_w, hw, rows, cols, sa_local, ANGLES)
    partials = pl.pallas_call(
        kernel,
        out_shape=jax.ShapeDtypeStruct((bs, 8, LANE), jnp.float32),
        grid_spec=pltpu.PrefetchScalarGridSpec(
            num_scalar_prefetch=0,
            grid=(bs,),
            in_specs=[
                pl.BlockSpec(memory_space=pltpu.MemorySpace.SMEM),   # float GT table
                pl.BlockSpec(memory_space=pltpu.MemorySpace.SMEM),   # int GT table
                pl.BlockSpec((None, BBOX_ATTRS, rows, cols), lambda b: (b, 0, 0, 0)),
            ],
            out_specs=pl.BlockSpec((None, 8, LANE), lambda b: (b, 0, 0)),
        ),
        compiler_params=pltpu.CompilerParams(
            dimension_semantics=("parallel",)),   # per-image partials, no cross-step carry
    )(jnp.asarray(tab["gtf"]), jnp.asarray(tab["gti"]), xr)

    conf_neg = jnp.sum(partials[:, 0, 0])
    loc_sum, conf_pos = _per_gt_terms(x, tab, bs, t_max, hw)

    # lambda_conf = lambda_loc = 1.0 ; reference divides every sum by bs
    return (conf_neg + conf_pos + loc_sum) / float(bs)


# -------------------- demo --------------------
if __name__ == "__main__":
    BS, H, W = 2, 16, 16
    C = NA3 * NANG * BBOX_ATTRS          # 108
    NT = 3                               # GT boxes per image

    key = jax.random.PRNGKey(0)
    kx, kt = jax.random.split(key)
    x = 0.5 * jax.random.normal(kx, (BS, C, H, W), dtype=jnp.float32)

    targets = []
    for b in range(BS):
        kb = jax.random.fold_in(kt, b)
        k1, k2, k3, k4 = jax.random.split(kb, 4)
        xy = jax.random.uniform(k1, (NT, 2), minval=0.1, maxval=0.9)
        wh = jax.random.uniform(k2, (NT, 2), minval=0.10, maxval=0.25)
        ang = jax.random.uniform(k3, (NT, 1), minval=-math.pi / 2, maxval=math.pi / 2)
        cls = jax.random.randint(k4, (NT, 1), 0, NUM_CLASSES).astype(jnp.float32)
        targets.append(np.asarray(jnp.concatenate([xy, wh, ang, cls], -1),
                                  dtype=np.float32))

    loss = yolo_loss(x, targets)
    loss = jax.block_until_ready(loss)
    assert np.isfinite(float(loss))
    print("KERNEL_OK")
</pallas_src>

<mosaic_0001>
module attributes {stable_mosaic.version = 11 : i64} {
  func.func @kernel(%arg0: i32, %arg1: memref<36xf32, #tpu.memory_space<smem>>, %arg2: memref<8xi32, #tpu.memory_space<smem>>, %arg3: memref<1x6x36x128xf32, #tpu.memory_space<vmem>>, %arg4: memref<1x8x128xf32, #tpu.memory_space<vmem>>) attributes {dimension_semantics = [#tpu.dimension_semantics<parallel>], iteration_bounds = array<i64: 2>, scalar_prefetch = 0 : i64, scratch_operands = 0 : i64, tpu.core_type = #tpu.core_type<tc>, window_params = [{transform_indices = @transform_0, window_bounds = array<i64: 36>}, {transform_indices = @transform_1, window_bounds = array<i64: 8>}, {transform_indices = @transform_2, window_bounds = array<i64: 1, 6, 36, 128>}, {transform_indices = @transform_3, window_bounds = array<i64: 1, 8, 128>}]} {
    %0 = tpu.iota {dimensions = array<i32: 0>} : vector<36x128xi32>
    %c128_i32 = arith.constant 128 : i32
    %1 = vector.broadcast %c128_i32 : i32 to vector<36x128xi32>
    %2 = arith.muli %0, %1 : vector<36x128xi32>
    %3 = tpu.iota {dimensions = array<i32: 1>} : vector<36x128xi32>
    %4 = arith.addi %2, %3 : vector<36x128xi32>
    %c8_i32 = arith.constant 8 : i32
    %5 = vector.broadcast %c8_i32 : i32 to vector<36x128xi32>
    %6 = arith.shrsi %4, %5 : vector<36x128xi32>
    %c255_i32 = arith.constant 255 : i32
    %7 = vector.broadcast %c255_i32 : i32 to vector<36x128xi32>
    %8 = arith.andi %4, %7 : vector<36x128xi32>
    %c4_i32 = arith.constant 4 : i32
    %9 = vector.broadcast %c4_i32 : i32 to vector<36x128xi32>
    %10 = arith.shrsi %8, %9 : vector<36x128xi32>
    %c15_i32 = arith.constant 15 : i32
    %11 = vector.broadcast %c15_i32 : i32 to vector<36x128xi32>
    %12 = arith.andi %8, %11 : vector<36x128xi32>
    %c0_i32 = arith.constant 0 : i32
    %13 = vector.broadcast %c0_i32 : i32 to vector<36x128xi32>
    %c6_i32 = arith.constant 6 : i32
    %14 = vector.broadcast %c6_i32 : i32 to vector<36x128xi32>
    %15 = arith.cmpi sge, %6, %14 : vector<36x128xi32>
    %16 = arith.extui %15 : vector<36x128xi1> to vector<36x128xi32>
    %17 = arith.addi %13, %16 : vector<36x128xi32>
    %c12_i32 = arith.constant 12 : i32
    %18 = vector.broadcast %c12_i32 : i32 to vector<36x128xi32>
    %19 = arith.cmpi sge, %6, %18 : vector<36x128xi32>
    %20 = arith.extui %19 : vector<36x128xi1> to vector<36x128xi32>
    %21 = arith.addi %17, %20 : vector<36x128xi32>
    %c6_i32_0 = arith.constant 6 : i32
    %22 = vector.broadcast %c6_i32_0 : i32 to vector<36x128xi32>
    %23 = arith.muli %21, %22 : vector<36x128xi32>
    %24 = arith.subi %6, %23 : vector<36x128xi32>
    %25 = arith.sitofp %12 : vector<36x128xi32> to vector<36x128xf32>
    %26 = arith.sitofp %10 : vector<36x128xi32> to vector<36x128xf32>
    %cst = arith.constant 4.125000e+00 : f32
    %27 = vector.broadcast %cst : f32 to vector<36x128xf32>
    %cst_1 = arith.constant 2.875000e+00 : f32
    %28 = vector.broadcast %cst_1 : f32 to vector<36x128xf32>
    %c0_i32_2 = arith.constant 0 : i32
    %29 = vector.broadcast %c0_i32_2 : i32 to vector<36x128xi32>
    %30 = arith.cmpi eq, %21, %29 : vector<36x128xi32>
    %cst_3 = arith.constant 1.250000e+00 : f32
    %31 = vector.broadcast %cst_3 : f32 to vector<36x128xf32>
    %32 = arith.select %30, %31, %27 : vector<36x128xi1>, vector<36x128xf32>
    %cst_4 = arith.constant 1.625000e+00 : f32
    %33 = vector.broadcast %cst_4 : f32 to vector<36x128xf32>
    %34 = arith.select %30, %33, %28 : vector<36x128xi1>, vector<36x128xf32>
    %c1_i32 = arith.constant 1 : i32
    %35 = vector.broadcast %c1_i32 : i32 to vector<36x128xi32>
    %36 = arith.cmpi eq, %21, %35 : vector<36x128xi32>
    %cst_5 = arith.constant 2.000000e+00 : f32
    %37 = vector.broadcast %cst_5 : f32 to vector<36x128xf32>
    %38 = arith.select %36, %37, %32 : vector<36x128xi1>, vector<36x128xf32>
    %cst_6 = arith.constant 3.750000e+00 : f32
    %39 = vector.broadcast %cst_6 : f32 to vector<36x128xf32>
    %40 = arith.select %36, %39, %34 : vector<36x128xi1>, vector<36x128xf32>
    %cst_7 = arith.constant 1.57079637 : f32
    %41 = vector.broadcast %cst_7 : f32 to vector<36x128xf32>
    %c0_i32_8 = arith.constant 0 : i32
    %42 = vector.broadcast %c0_i32_8 : i32 to vector<36x128xi32>
    %43 = arith.cmpi eq, %24, %42 : vector<36x128xi32>
    %cst_9 = arith.constant -1.04719758 : f32
    %44 = vector.broadcast %cst_9 : f32 to vector<36x128xf32>
    %45 = arith.select %43, %44, %41 : vector<36x128xi1>, vector<36x128xf32>
    %c1_i32_10 = arith.constant 1 : i32
    %46 = vector.broadcast %c1_i32_10 : i32 to vector<36x128xi32>
    %47 = arith.cmpi eq, %24, %46 : vector<36x128xi32>
    %cst_11 = arith.constant -0.52359879 : f32
    %48 = vector.broadcast %cst_11 : f32 to vector<36x128xf32>
    %49 = arith.select %47, %48, %45 : vector<36x128xi1>, vector<36x128xf32>
    %c2_i32 = arith.constant 2 : i32
    %50 = vector.broadcast %c2_i32 : i32 to vector<36x128xi32>
    %51 = arith.cmpi eq, %24, %50 : vector<36x128xi32>
    %cst_12 = arith.constant 0.000000e+00 : f32
    %52 = vector.broadcast %cst_12 : f32 to vector<36x128xf32>
    %53 = arith.select %51, %52, %49 : vector<36x128xi1>, vector<36x128xf32>
    %c3_i32 = arith.constant 3 : i32
    %54 = vector.broadcast %c3_i32 : i32 to vector<36x128xi32>
    %55 = arith.cmpi eq, %24, %54 : vector<36x128xi32>
    %cst_13 = arith.constant 0.52359879 : f32
    %56 = vector.broadcast %cst_13 : f32 to vector<36x128xf32>
    %57 = arith.select %55, %56, %53 : vector<36x128xi1>, vector<36x128xf32>
    %c4_i32_14 = arith.constant 4 : i32
    %58 = vector.broadcast %c4_i32_14 : i32 to vector<36x128xi32>
    %59 = arith.cmpi eq, %24, %58 : vector<36x128xi32>
    %cst_15 = arith.constant 1.04719758 : f32
    %60 = vector.broadcast %cst_15 : f32 to vector<36x128xf32>
    %61 = arith.select %59, %60, %57 : vector<36x128xi1>, vector<36x128xf32>
    %c0 = arith.constant 0 : index
    %c0_16 = arith.constant 0 : index
    %c0_17 = arith.constant 0 : index
    %c0_18 = arith.constant 0 : index
    %62 = vector.load %arg3[%c0, %c0_16, %c0_17, %c0_18] : memref<1x6x36x128xf32, #tpu.memory_space<vmem>>, vector<1x1x36x128xf32>
    %63 = vector.shape_cast %62 : vector<1x1x36x128xf32> to vector<36x128xf32>
    %64 = arith.negf %63 : vector<36x128xf32>
    %65 = math.exp %64 : vector<36x128xf32>
    %cst_19 = arith.constant 1.000000e+00 : f32
    %66 = vector.broadcast %cst_19 : f32 to vector<36x128xf32>
    %67 = arith.addf %66, %65 : vector<36x128xf32>
    %68 = arith.divf %66, %67 : vector<36x128xf32>
    %69 = arith.addf %68, %25 : vector<36x128xf32>
    %c0_20 = arith.constant 0 : index
    %c1 = arith.constant 1 : index
    %c0_21 = arith.constant 0 : index
    %c0_22 = arith.constant 0 : index
    %70 = vector.load %arg3[%c0_20, %c1, %c0_21, %c0_22] : memref<1x6x36x128xf32, #tpu.memory_space<vmem>>, vector<1x1x36x128xf32>
    %71 = vector.shape_cast %70 : vector<1x1x36x128xf32> to vector<36x128xf32>
    %72 = arith.negf %71 : vector<36x128xf32>
    %73 = math.exp %72 : vector<36x128xf32>
    %cst_23 = arith.constant 1.000000e+00 : f32
    %74 = vector.broadcast %cst_23 : f32 to vector<36x128xf32>
    %75 = arith.addf %74, %73 : vector<36x128xf32>
    %76 = arith.divf %74, %75 : vector<36x128xf32>
    %77 = arith.addf %76, %26 : vector<36x128xf32>
    %c0_24 = arith.constant 0 : index
    %c2 = arith.constant 2 : index
    %c0_25 = arith.constant 0 : index
    %c0_26 = arith.constant 0 : index
    %78 = vector.load %arg3[%c0_24, %c2, %c0_25, %c0_26] : memref<1x6x36x128xf32, #tpu.memory_space<vmem>>, vector<1x1x36x128xf32>
    %79 = vector.shape_cast %78 : vector<1x1x36x128xf32> to vector<36x128xf32>
    %80 = math.exp %79 : vector<36x128xf32>
    %81 = arith.mulf %80, %38 : vector<36x128xf32>
    %c0_27 = arith.constant 0 : index
    %c3 = arith.constant 3 : index
    %c0_28 = arith.constant 0 : index
    %c0_29 = arith.constant 0 : index
    %82 = vector.load %arg3[%c0_27, %c3, %c0_28, %c0_29] : memref<1x6x36x128xf32, #tpu.memory_space<vmem>>, vector<1x1x36x128xf32>
    %83 = vector.shape_cast %82 : vector<1x1x36x128xf32> to vector<36x128xf32>
    %84 = math.exp %83 : vector<36x128xf32>
    %85 = arith.mulf %84, %40 : vector<36x128xf32>
    %c0_30 = arith.constant 0 : index
    %c4 = arith.constant 4 : index
    %c0_31 = arith.constant 0 : index
    %c0_32 = arith.constant 0 : index
    %86 = vector.load %arg3[%c0_30, %c4, %c0_31, %c0_32] : memref<1x6x36x128xf32, #tpu.memory_space<vmem>>, vector<1x1x36x128xf32>
    %87 = vector.shape_cast %86 : vector<1x1x36x128xf32> to vector<36x128xf32>
    %88 = arith.addf %87, %61 : vector<36x128xf32>
    %cst_33 = arith.constant 5.000000e-01 : f32
    %89 = vector.broadcast %cst_33 : f32 to vector<36x128xf32>
    %90 = arith.mulf %89, %81 : vector<36x128xf32>
    %91 = arith.subf %69, %90 : vector<36x128xf32>
    %cst_34 = arith.constant 5.000000e-01 : f32
    %92 = vector.broadcast %cst_34 : f32 to vector<36x128xf32>
    %93 = arith.mulf %92, %81 : vector<36x128xf32>
    %94 = arith.addf %69, %93 : vector<36x128xf32>
    %cst_35 = arith.constant 5.000000e-01 : f32
    %95 = vector.broadcast %cst_35 : f32 to vector<36x128xf32>
    %96 = arith.mulf %95, %85 : vector<36x128xf32>
    %97 = arith.subf %77, %96 : vector<36x128xf32>
    %cst_36 = arith.constant 5.000000e-01 : f32
    %98 = vector.broadcast %cst_36 : f32 to vector<36x128xf32>
    %99 = arith.mulf %98, %85 : vector<36x128xf32>
    %100 = arith.addf %77, %99 : vector<36x128xf32>
    %101 = arith.mulf %81, %85 : vector<36x128xf32>
    %102 = math.cos %88 : vector<36x128xf32>
    %103 = math.sin %88 : vector<36x128xf32>
    %104 = arith.index_cast %arg0 : i32 to index
    %105 = memref.load %arg2[%104] : memref<8xi32, #tpu.memory_space<smem>>
    %c3_i32_37 = arith.constant 3 : i32
    %106 = arith.muli %arg0, %c3_i32_37 : i32
    %c2_i32_38 = arith.constant 2 : i32
    %107 = arith.addi %c2_i32_38, %106 : i32
    %c18_i32 = arith.constant 18 : i32
    %108 = arith.muli %arg0, %c18_i32 : i32
    %cst_39 = arith.constant 1.000000e+00 : f32
    %109 = vector.broadcast %cst_39 : f32 to vector<36x128xf32>
    %c0_i32_40 = arith.constant 0 : i32
    %110 = arith.subi %105, %c0_i32_40 : i32
    %111 = arith.addi %c0_i32_40, %110 : i32
    %c1_i32_41 = arith.constant 1 : i32
    %112 = scf.for %arg5 = %c0_i32_40 to %111 step %c1_i32_41 iter_args(%arg6 = %109) -> (vector<36x128xf32>)  : i32 {
      %c6_i32_55 = arith.constant 6 : i32
      %141 = arith.muli %arg5, %c6_i32_55 : i32
      %142 = arith.addi %108, %141 : i32
      %c0_i32_56 = arith.constant 0 : i32
      %143 = arith.addi %142, %c0_i32_56 : i32
      %144 = arith.index_cast %143 : i32 to index
      %145 = memref.load %arg1[%144] : memref<36xf32, #tpu.memory_space<smem>>
      %c1_i32_57 = arith.constant 1 : i32
      %146 = arith.addi %142, %c1_i32_57 : i32
      %147 = arith.index_cast %146 : i32 to index
      %148 = memref.load %arg1[%147] : memref<36xf32, #tpu.memory_space<smem>>
      %c2_i32_58 = arith.constant 2 : i32
      %149 = arith.addi %142, %c2_i32_58 : i32
      %150 = arith.index_cast %149 : i32 to index
      %151 = memref.load %arg1[%150] : memref<36xf32, #tpu.memory_space<smem>>
      %c3_i32_59 = arith.constant 3 : i32
      %152 = arith.addi %142, %c3_i32_59 : i32
      %153 = arith.index_cast %152 : i32 to index
      %154 = memref.load %arg1[%153] : memref<36xf32, #tpu.memory_space<smem>>
      %c4_i32_60 = arith.constant 4 : i32
      %155 = arith.addi %142, %c4_i32_60 : i32
      %156 = arith.index_cast %155 : i32 to index
      %157 = memref.load %arg1[%156] : memref<36xf32, #tpu.memory_space<smem>>
      %c5_i32 = arith.constant 5 : i32
      %158 = arith.addi %142, %c5_i32 : i32
      %159 = arith.index_cast %158 : i32 to index
      %160 = memref.load %arg1[%159] : memref<36xf32, #tpu.memory_space<smem>>
      %161 = arith.addi %107, %arg5 : i32
      %162 = arith.index_cast %161 : i32 to index
      %163 = memref.load %arg2[%162] : memref<8xi32, #tpu.memory_space<smem>>
      %cst_61 = arith.constant 5.000000e-01 : f32
      %164 = arith.mulf %cst_61, %151 : f32
      %165 = arith.subf %145, %164 : f32
      %cst_62 = arith.constant 5.000000e-01 : f32
      %166 = arith.mulf %cst_62, %151 : f32
      %167 = arith.addf %145, %166 : f32
      %cst_63 = arith.constant 5.000000e-01 : f32
      %168 = arith.mulf %cst_63, %154 : f32
      %169 = arith.subf %148, %168 : f32
      %cst_64 = arith.constant 5.000000e-01 : f32
      %170 = arith.mulf %cst_64, %154 : f32
      %171 = arith.addf %148, %170 : f32
      %172 = vector.broadcast %167 : f32 to vector<36x128xf32>
      %173 = arith.minimumf %94, %172 : vector<36x128xf32>
      %174 = vector.broadcast %165 : f32 to vector<36x128xf32>
      %175 = arith.maximumf %91, %174 : vector<36x128xf32>
      %176 = arith.subf %173, %175 : vector<36x128xf32>
      %cst_65 = arith.constant 0.000000e+00 : f32
      %177 = vector.broadcast %cst_65 : f32 to vector<36x128xf32>
      %178 = arith.maximumf %176, %177 : vector<36x128xf32>
      %179 = vector.broadcast %171 : f32 to vector<36x128xf32>
      %180 = arith.minimumf %100, %179 : vector<36x128xf32>
      %181 = vector.broadcast %169 : f32 to vector<36x128xf32>
      %182 = arith.maximumf %97, %181 : vector<36x128xf32>
      %183 = arith.subf %180, %182 : vector<36x128xf32>
      %cst_66 = arith.constant 0.000000e+00 : f32
      %184 = vector.broadcast %cst_66 : f32 to vector<36x128xf32>
      %185 = arith.maximumf %183, %184 : vector<36x128xf32>
      %186 = arith.mulf %178, %185 : vector<36x128xf32>
      %187 = arith.subf %101, %186 : vector<36x128xf32>
      %188 = arith.mulf %151, %154 : f32
      %189 = vector.broadcast %188 : f32 to vector<36x128xf32>
      %190 = arith.addf %187, %189 : vector<36x128xf32>
      %191 = vector.broadcast %157 : f32 to vector<36x128xf32>
      %192 = arith.mulf %191, %102 : vector<36x128xf32>
      %193 = vector.broadcast %160 : f32 to vector<36x128xf32>
      %194 = arith.mulf %193, %103 : vector<36x128xf32>
      %195 = arith.addf %192, %194 : vector<36x128xf32>
      %196 = math.absf %195 : vector<36x128xf32>
      %197 = arith.mulf %186, %196 : vector<36x128xf32>
      %cst_67 = arith.constant 3.000000e-01 : f32
      %198 = vector.broadcast %cst_67 : f32 to vector<36x128xf32>
      %199 = arith.mulf %198, %190 : vector<36x128xf32>
      %200 = arith.cmpf ogt, %197, %199 : vector<36x128xf32>
      %201 = vector.broadcast %163 : i32 to vector<36x128xi32>
      %202 = arith.cmpi eq, %4, %201 : vector<36x128xi32>
      %203 = arith.ori %200, %202 : vector<36x128xi1>
      %cst_68 = arith.constant 0.000000e+00 : f32
      %204 = vector.broadcast %cst_68 : f32 to vector<36x128xf32>
      %205 = arith.select %203, %204, %arg6 : vector<36x128xi1>, vector<36x128xf32>
      scf.yield %205 : vector<36x128xf32>
    }
    %c0_42 = arith.constant 0 : index
    %c5 = arith.constant 5 : index
    %c0_43 = arith.constant 0 : index
    %c0_44 = arith.constant 0 : index
    %113 = vector.load %arg3[%c0_42, %c5, %c0_43, %c0_44] : memref<1x6x36x128xf32, #tpu.memory_space<vmem>>, vector<1x1x36x128xf32>
    %114 = vector.shape_cast %113 : vector<1x1x36x128xf32> to vector<36x128xf32>
    %115 = arith.negf %114 : vector<36x128xf32>
    %116 = math.exp %115 : vector<36x128xf32>
    %cst_45 = arith.constant 1.000000e+00 : f32
    %117 = vector.broadcast %cst_45 : f32 to vector<36x128xf32>
    %118 = arith.addf %117, %116 : vector<36x128xf32>
    %119 = arith.divf %117, %118 : vector<36x128xf32>
    %cst_46 = arith.constant 1.000000e-07 : f32
    %cst_47 = arith.constant 0.99999988 : f32
    %120 = vector.broadcast %cst_46 : f32 to vector<36x128xf32>
    %121 = arith.maximumf %120, %119 : vector<36x128xf32>
    %122 = vector.broadcast %cst_47 : f32 to vector<36x128xf32>
    %123 = arith.minimumf %122, %121 : vector<36x128xf32>
    %cst_48 = arith.constant -5.000000e-02 : f32
    %124 = vector.broadcast %cst_48 : f32 to vector<36x128xf32>
    %125 = arith.mulf %124, %123 : vector<36x128xf32>
    %cst_49 = arith.constant 1.000000e+00 : f32
    %126 = vector.broadcast %cst_49 : f32 to vector<36x128xf32>
    %127 = arith.subf %126, %123 : vector<36x128xf32>
    %128 = math.log %127 : vector<36x128xf32>
    %129 = arith.mulf %125, %128 : vector<36x128xf32>
    %130 = arith.mulf %129, %112 : vector<36x128xf32>
    %131 = vector.shape_cast %130 : vector<36x128xf32> to vector<1x36x128xf32>
    %cst_50 = arith.constant dense<0.000000e+00> : vector<1xf32>
    %132 = vector.multi_reduction <add>, %131, %cst_50 [1, 2] : vector<1x36x128xf32> to vector<1xf32>
    %133 = vector.shape_cast %132 : vector<1xf32> to vector<1x1x1xf32>
    %134 = vector.extract %133[0, 0, 0] : f32 from vector<1x1x1xf32>
    %cst_51 = arith.constant 0.000000e+00 : f32
    %135 = vector.broadcast %cst_51 : f32 to vector<8x128xf32>
    %136 = vector.broadcast %134 : f32 to vector<8x128xf32>
    %137 = arith.addf %135, %136 : vector<8x128xf32>
    %c0_52 = arith.constant 0 : index
    %c0_53 = arith.constant 0 : index
    %c0_54 = arith.constant 0 : index
    %138 = vector.load %arg4[%c0_52, %c0_53, %c0_54] : memref<1x8x128xf32, #tpu.memory_space<vmem>>, vector<1x8x128xf32>
    %139 = vector.shape_cast %138 : vector<1x8x128xf32> to vector<8x128xf32>
    %140 = vector.shape_cast %137 : vector<8x128xf32> to vector<1x8x128xf32>
    tpu.vector_store %arg4[%c0_52, %c0_53, %c0_54], %140 {strides = array<i32>} : memref<1x8x128xf32, #tpu.memory_space<vmem>>, vector<1x8x128xf32>,
    return
  }
  func.func @transform_0(%arg0: i32) -> i32 {
    %c0_i32 = arith.constant 0 : i32
    %c0_i32_0 = arith.constant 0 : i32
    return %c0_i32 : i32
  }
  func.func @transform_1(%arg0: i32) -> i32 {
    %c0_i32 = arith.constant 0 : i32
    %c0_i32_0 = arith.constant 0 : i32
    return %c0_i32 : i32
  }
  func.func @transform_2(%arg0: i32) -> (i32, i32, i32, i32) {
    %c0_i32 = arith.constant 0 : i32
    %c0_i32_0 = arith.constant 0 : i32
    %c0_i32_1 = arith.constant 0 : i32
    %c0_i32_2 = arith.constant 0 : i32
    return %arg0, %c0_i32, %c0_i32_0, %c0_i32_1 : i32, i32, i32, i32
  }
  func.func @transform_3(%arg0: i32) -> (i32, i32, i32) {
    %c0_i32 = arith.constant 0 : i32
    %c0_i32_0 = arith.constant 0 : i32
    %c0_i32_1 = arith.constant 0 : i32
    return %arg0, %c0_i32, %c0_i32_0 : i32, i32, i32
  }
}

</mosaic_0001>

<llo_original>
// kernel: tpu_custom_call.1
$region0: #{tpu_custom_call.1}
  #allocation0 [shape = 'u32[]', space=smem, size = 0x4, offset = 0x4, fixed_abs, tag = 'smem constant byte address 0x4 - core index']
  #allocation1 [shape = 'u32[72,128]{1,0:T(1,128)}', space=vmem, size = 0x9000, scoped, tag = 'internal scratch']
  %s0 = inlined_call_operand.vmem [shape: f32[36], index: 0, kind: input, shape index: {}]
  %s1 = inlined_call_operand.vmem [shape: s32[8], index: 1, kind: input, shape index: {}]
  %s2 = inlined_call_operand.vmem [shape: f32[2,6,36,128], index: 2, kind: input, shape index: {}]
  %s3 = inlined_call_operand.hbm [shape: f32[2,8,128], index: 3, kind: output, shape index: {}]
  %s4 = sld [smem:[#allocation0]]
  $region60: #{tpu_custom_call.1} parent=0
    _
  %s6 = ssub.s32 1, %s4
  %s7 = scalar_select 0, %s6, %s4
  $region1: #{tpu_custom_call.1} parent=0
    #allocation2 [shape = 'u8[512]{0}', space=smem, size = 0x200, scoped, tag = 'input window, operand 0, single buffered']
    #allocation3 [shape = 's32[2]{0}', space=sflag, size = 0x8, scoped, tag = 'scoped memory for tpu_custom_call.1']
    #allocation4 [shape = 's32[2]{0}', space=sflag, size = 0x8, scoped, tag = 'scoped memory for tpu_custom_call.1']
    #allocation5 [shape = 'u8[512]{0}', space=smem, size = 0x200, scoped, tag = 'input window, operand 1, single buffered']
    #allocation6 [shape = 's32[1]{0}', space=sflag, size = 0x4, scoped, tag = 'scoped memory for tpu_custom_call.1']
    #allocation7 [shape = 'u8[8192]{0}', space=vmem, size = 0x2000, scoped, tag = 'output window, operand 0']
    %8 = vsyncpa [#allocation4], 0
    %9 = vsyncpa [#allocation6], 0
    %10 = vsyncpa [#allocation3], 0
    %s11 = scalar_lea.sflag [#allocation3], 1
    %12 = vsyncpa %s11, 0
    loop: start=0, step=1, limit=4
    $region2: #{tpu_custom_call.1} parent=1 // loop_pre_header
      _
    $region3: #{tpu_custom_call.1} parent=1 // loop_header
      %s14 = sphi 0, %s18
      %p15 = scmp.ge.s32.totalorder %s14, 4
      %s22 = sphi 0, %s22
      %s24 = sphi 0, %s22
      %s25 = sphi 0, %s24
      %s39 = sphi 0, %s25
      %s43 = sphi 0, %s43
      %s45 = sphi 0, %s43
      %s46 = sphi 0, %s45
      %s60 = sphi 0, %s46
      %s66 = sphi 0, %s68
      %s69 = sphi 0, %s66
      %s70 = sphi 0, %s69
      %s86 = sphi 0, %s70
      %s92 = sphi 0, %s94
      %s95 = sphi 0, %s92
      %s96 = sphi 0, %s95
      %s112 = sphi 0, %s96
    $region4: #{tpu_custom_call.1} parent=1 // loop_header_branch
      %17 = sbr.rel (%p15) target = $region8
    $region5: #{tpu_custom_call.1} parent=1 // loop_body
      %s19 = ssub.s32 %s14, 1
      %s20 = ssub.s32 %s14, 2
      %s21 = sadd.s32 %s14, 1
      %s23 = sadd.s32 %s22, 1
      %p26 = scmp.eq.s32.totalorder %s14, 1
      %p27 = scmp.ne.s32.totalorder %s22, %s24
      %p28 = scmp.eq.s32.totalorder %s14, 0
      %p29 = por %p27, %p28
      %p30 = scmp.ne.s32.totalorder %s22, %s24
      %p31 = scmp.eq.s32.totalorder %s19, 1
      %p32 = por %p30, %p31
      %p33 = scmp.ne.s32.totalorder %s24, %s25
      %p34 = scmp.eq.s32.totalorder %s19, 0
      %p35 = por %p33, %p34
      %p36 = scmp.ne.s32.totalorder %s24, %s25
      %p37 = scmp.eq.s32.totalorder %s20, 1
      %p38 = por %p36, %p37
      %p40 = scmp.ne.s32.totalorder %s25, %s39
      %p41 = scmp.eq.s32.totalorder %s20, 0
      %p42 = por %p40, %p41
      %s44 = sadd.s32 %s43, 1
      %p47 = scmp.eq.s32.totalorder %s14, 1
      %p48 = scmp.ne.s32.totalorder %s43, %s45
      %p49 = scmp.eq.s32.totalorder %s14, 0
      %p50 = por %p48, %p49
      %p51 = scmp.ne.s32.totalorder %s43, %s45
      %p52 = scmp.eq.s32.totalorder %s19, 1
      %p53 = por %p51, %p52
      %p54 = scmp.ne.s32.totalorder %s45, %s46
      %p55 = scmp.eq.s32.totalorder %s19, 0
      %p56 = por %p54, %p55
      %p57 = scmp.ne.s32.totalorder %s45, %s46
      %p58 = scmp.eq.s32.totalorder %s20, 1
      %p59 = por %p57, %p58
      %p61 = scmp.ne.s32.totalorder %s46, %s60
      %p62 = scmp.eq.s32.totalorder %s20, 0
      %p63 = por %p61, %p62
      %s64 = ssub.s32 %s14, %s21
      %p65 = scmp.eq.s32.totalorder %s64, 0
      %s67 = sadd.s32 %s66, 1
      %s68 = scalar_select %p65, %s66, %s67
      %p71 = pneg %p65
      %p72 = scmp.eq.s32.totalorder %s14, 1
      %p73 = por %p71, %p72
      %p74 = scmp.ne.s32.totalorder %s66, %s69
      %p75 = scmp.eq.s32.totalorder %s14, 0
      %p76 = por %p74, %p75
      %p77 = scmp.ne.s32.totalorder %s66, %s69
      %p78 = scmp.eq.s32.totalorder %s19, 1
      %p79 = por %p77, %p78
      %p80 = scmp.ne.s32.totalorder %s69, %s70
      %p81 = scmp.eq.s32.totalorder %s19, 0
      %p82 = por %p80, %p81
      %p83 = scmp.ne.s32.totalorder %s69, %s70
      %p84 = scmp.eq.s32.totalorder %s20, 1
      %p85 = por %p83, %p84
      %p87 = scmp.ne.s32.totalorder %s70, %s86
      %p88 = scmp.eq.s32.totalorder %s20, 0
      %p89 = por %p87, %p88
      %s90 = ssub.s32 %s14, %s21
      %p91 = scmp.eq.s32.totalorder %s90, 0
      %s93 = sadd.s32 %s92, 1
      %s94 = scalar_select %p91, %s92, %s93
      %p97 = pneg %p91
      %p98 = scmp.eq.s32.totalorder %s14, 1
      %p99 = por %p97, %p98
      %p100 = scmp.ne.s32.totalorder %s92, %s95
      %p101 = scmp.eq.s32.totalorder %s14, 0
      %p102 = por %p100, %p101
      %p103 = scmp.ne.s32.totalorder %s92, %s95
      %p104 = scmp.eq.s32.totalorder %s19, 1
      %p105 = por %p103, %p104
      %p106 = scmp.ne.s32.totalorder %s95, %s96
      %p107 = scmp.eq.s32.totalorder %s19, 0
      %p108 = por %p106, %p107
      %p109 = scmp.ne.s32.totalorder %s95, %s96
      %p110 = scmp.eq.s32.totalorder %s20, 1
      %p111 = por %p109, %p110
      %p113 = scmp.ne.s32.totalorder %s96, %s112
      %p114 = scmp.eq.s32.totalorder %s20, 0
      %p115 = por %p113, %p114
      %p116 = scmp.le.s32.totalorder 1, %s14
      %p117 = scmp.lt.s32.totalorder %s14, 3
      %p118 = pnand %p116, %p117
      %p119 = pneg %p118
      // Predicated region
      $region9: #{tpu_custom_call.1} parent=5 // pred_check
        _
      $region10: #{tpu_custom_call.1} parent=5 // pred_check_branch
        %121 = sbr.rel (%p118) target = $region12
      $region11: #{tpu_custom_call.1} parent=5 // pred_region
        %s122 = ssub.s32 %s14, 1
        // Predicated region
        $region13: #{tpu_custom_call.1} parent=11 // pred_check
          %p123 = pneg %p35
        $region14: #{tpu_custom_call.1} parent=11 // pred_check_branch
          %125 = sbr.rel (%p123) target = $region16
        $region15: #{tpu_custom_call.1} parent=11 // pred_region
          %127 = vsyncadd [#allocation4], 0
          %s129 = sshll.u32 %s0, 4
          %s130 = int_to_ptr.vmem [resolvable:$true] %s129
          %132 = dma.vmem_to_smem %s130, 16, [#allocation2], [#allocation4]
        $region16: #{tpu_custom_call.1} parent=11 // pred_fallthru
          _
        // Predicated region
        $region17: #{tpu_custom_call.1} parent=11 // pred_check
          %p133 = pneg %p56
        $region18: #{tpu_custom_call.1} parent=11 // pred_check_branch
          %135 = sbr.rel (%p133) target = $region20
        $region19: #{tpu_custom_call.1} parent=11 // pred_region
          %137 = vsyncadd [#allocation6], 0
          %s139 = sshll.u32 %s1, 4
          %s140 = int_to_ptr.vmem [resolvable:$true] %s139
          %142 = dma.vmem_to_smem %s140, 16, [#allocation5], [#allocation6]
        $region20: #{tpu_custom_call.1} parent=11 // pred_fallthru
          _
      $region12: #{tpu_custom_call.1} parent=5 // pred_fallthru
        _
      %p143 = scmp.lt.s32.totalorder %s14, 2
      // Predicated region
      $region21: #{tpu_custom_call.1} parent=5 // pred_check
        %p144 = pneg %p143
      $region22: #{tpu_custom_call.1} parent=5 // pred_check_branch
        %146 = sbr.rel (%p144) target = $region24
      $region23: #{tpu_custom_call.1} parent=5 // pred_region
        // Predicated region
        $region25: #{tpu_custom_call.1} parent=23 // pred_check
          %p147 = pneg %p76
        $region26: #{tpu_custom_call.1} parent=23 // pred_check_branch
          %149 = sbr.rel (%p147) target = $region28
        $region27: #{tpu_custom_call.1} parent=23 // pred_region
          %p150 = scmp.lt.s32.totalorder %s14, 1
          %s151 = scalar_select %p150, %s14, 1
          %s152 = smul.addr %s151, 30
          %s153 = smul.addr %s152, 8
          %s154 = scalar_lea.vmem %s2, %s153
        $region28: #{tpu_custom_call.1} parent=23 // pred_fallthru
          _
      $region24: #{tpu_custom_call.1} parent=5 // pred_fallthru
        _
      %p155 = scmp.le.s32.totalorder 1, %s14
      %p156 = scmp.lt.s32.totalorder %s14, 3
      %p157 = pnand %p155, %p156
      %p158 = pneg %p157
      // Predicated region
      $region29: #{tpu_custom_call.1} parent=5 // pred_check
        _
      $region30: #{tpu_custom_call.1} parent=5 // pred_check_branch
        %160 = sbr.rel (%p157) target = $region32
      $region31: #{tpu_custom_call.1} parent=5 // pred_region
        %s161 = ssub.s32 %s14, 1
        // Predicated region
        $region33: #{tpu_custom_call.1} parent=31 // pred_check
          %p162 = pneg %p35
        $region34: #{tpu_custom_call.1} parent=31 // pred_check_branch
          %164 = sbr.rel (%p162) target = $region36
        $region35: #{tpu_custom_call.1} parent=31 // pred_region
          %166 = dma.done [#allocation4], 16
        $region36: #{tpu_custom_call.1} parent=31 // pred_fallthru
          _
        // Predicated region
        $region37: #{tpu_custom_call.1} parent=31 // pred_check
          %p167 = pneg %p56
        $region38: #{tpu_custom_call.1} parent=31 // pred_check_branch
          %169 = sbr.rel (%p167) target = $region40
        $region39: #{tpu_custom_call.1} parent=31 // pred_region
          %171 = dma.done [#allocation6], 16
        $region40: #{tpu_custom_call.1} parent=31 // pred_fallthru
          _
        %172 = sfence
        %p173 = pneg %p35
        %p174 = pneg %p32
        %p175 = pneg %p56
        %p176 = pneg %p53
        %p177 = scmp.lt.s32.totalorder %s19, 1
        %s178 = scalar_select %p177, %s19, 1
        %s179 = smul.addr %s178, 30
        %s180 = smul.addr %s179, 8
        %s181 = scalar_lea.vmem %s2, %s180
        %p182 = pneg %p82
        %p183 = pneg %p79
        %p184 = pneg %p108
        %p185 = pneg %p105
        %s186 = sand.u32 %s95, 1
        %s187 = scalar_lea.sflag [#allocation3], %s186
        %s188 = sand.u32 %s95, 1
        %s189 = smul.addr %s188, 8
        %s190 = scalar_lea.vmem [#allocation7], %s189
        %p191 = scmp.lt.s32.totalorder %s19, 1
        %s192 = scalar_select %p191, %s19, 1
        %s193 = smul.addr %s192, 30
        %s194 = smul.addr %s193, 8
        %s195 = scalar_lea.vmem %s2, %s194
        %v196 = vlaneseq
        %v197 = vshrl.u32 %v196, 7
        %v198 = vadd.s32 %v197, 8
        %v199 = vadd.s32 %v197, 16
        %v200 = vadd.s32 %v197, 24
        %v201 = vadd.s32 %v197, 32
        %v202 = vmul.u32 %v197, 128
        %v203 = vmul.u32 %v198, 128
        %v204 = vmul.u32 %v199, 128
        %v205 = vmul.u32 %v200, 128
        %v206 = vmul.u32 %v201, 128
        %v207 = vlaneseq
        %v208 = vand.u32 %v207, 127
        %v209 = vadd.s32 %v202, %v208
        %v210 = vadd.s32 %v203, %v208
        %v211 = vadd.s32 %v204, %v208
        %v212 = vadd.s32 %v205, %v208
        %v213 = vadd.s32 %v206, %v208
        %v214 = vshra.s32 %v209, 8
        %v215 = vshra.s32 %v210, 8
        %v216 = vshra.s32 %v211, 8
        %v217 = vshra.s32 %v212, 8
        %v218 = vshra.s32 %v213, 8
        %v219 = vand.u32 %v209, 255
        %v220 = vand.u32 %v210, 255
        %v221 = vand.u32 %v211, 255
        %v222 = vand.u32 %v212, 255
        %v223 = vand.u32 %v213, 255
        %v224 = vshra.s32 %v219, 4
        %v225 = vshra.s32 %v220, 4
        %v226 = vshra.s32 %v221, 4
        %v227 = vshra.s32 %v222, 4
        %v228 = vshra.s32 %v223, 4
        %v229 = vand.u32 %v219, 15
        %v230 = vand.u32 %v220, 15
        %v231 = vand.u32 %v221, 15
        %v232 = vand.u32 %v222, 15
        %v233 = vand.u32 %v223, 15
        %vm234 = vcmp.ge.s32.totalorder %v214, 6
        %vm235 = vcmp.ge.s32.totalorder %v215, 6
        %vm236 = vcmp.ge.s32.totalorder %v216, 6
        %vm237 = vcmp.ge.s32.totalorder %v217, 6
        %vm238 = vcmp.ge.s32.totalorder %v218, 6
        %v239 = vsel %vm234, 1, 0
        %v240 = vsel %vm235, 1, 0
        %v241 = vsel %vm236, 1, 0
        %v242 = vsel %vm237, 1, 0
        %v243 = vsel %vm238, 1, 0
        %vm244 = vcmp.ge.s32.totalorder %v214, 12
        %vm245 = vcmp.ge.s32.totalorder %v215, 12
        %vm246 = vcmp.ge.s32.totalorder %v216, 12
        %vm247 = vcmp.ge.s32.totalorder %v217, 12
        %vm248 = vcmp.ge.s32.totalorder %v218, 12
        %v249 = vsel %vm244, 1, 0
        %v250 = vsel %vm245, 1, 0
        %v251 = vsel %vm246, 1, 0
        %v252 = vsel %vm247, 1, 0
        %v253 = vsel %vm248, 1, 0
        %v254 = vadd.s32 %v239, %v249
        %v255 = vadd.s32 %v240, %v250
        %v256 = vadd.s32 %v241, %v251
        %v257 = vadd.s32 %v242, %v252
        %v258 = vadd.s32 %v243, %v253
        %v259 = vmul.u32 %v254, 6
        %v260 = vmul.u32 %v255, 6
        %v261 = vmul.u32 %v256, 6
        %v262 = vmul.u32 %v257, 6
        %v263 = vmul.u32 %v258, 6
        %v264 = vsub.s32 %v214, %v259
        %v265 = vsub.s32 %v215, %v260
        %v266 = vsub.s32 %v216, %v261
        %v267 = vsub.s32 %v217, %v262
        %v268 = vsub.s32 %v218, %v263
        %v269 = vcvt.s32.f32 %v229
        %v270 = vcvt.s32.f32 %v230
        %v271 = vcvt.s32.f32 %v231
        %v272 = vcvt.s32.f32 %v232
        %v273 = vcvt.s32.f32 %v233
        %v274 = vcvt.s32.f32 %v224
        %v275 = vcvt.s32.f32 %v225
        %v276 = vcvt.s32.f32 %v226
        %v277 = vcvt.s32.f32 %v227
        %v278 = vcvt.s32.f32 %v228
        %vm279 = vcmp.eq.s32.totalorder %v254, 0
        %vm280 = vcmp.eq.s32.totalorder %v255, 0
        %vm281 = vcmp.eq.s32.totalorder %v256, 0
        %vm282 = vcmp.eq.s32.totalorder %v257, 0
        %vm283 = vcmp.eq.s32.totalorder %v258, 0
        %v284 = vsel %vm279, 1.25, 4.125
        %v285 = vsel %vm280, 1.25, 4.125
        %v286 = vsel %vm281, 1.25, 4.125
        %v287 = vsel %vm282, 1.25, 4.125
        %v288 = vsel %vm283, 1.25, 4.125
        %v289 = vsel %vm279, 1.625, 2.875
        %v290 = vsel %vm280, 1.625, 2.875
        %v291 = vsel %vm281, 1.625, 2.875
        %v292 = vsel %vm282, 1.625, 2.875
        %v293 = vsel %vm283, 1.625, 2.875
        %vm294 = vcmp.eq.s32.totalorder %v254, 1
        %vm295 = vcmp.eq.s32.totalorder %v255, 1
        %vm296 = vcmp.eq.s32.totalorder %v256, 1
        %vm297 = vcmp.eq.s32.totalorder %v257, 1
        %vm298 = vcmp.eq.s32.totalorder %v258, 1
        %v299 = vsel %vm294, 2.0, %v284
        %v300 = vsel %vm295, 2.0, %v285
        %v301 = vsel %vm296, 2.0, %v286
        %v302 = vsel %vm297, 2.0, %v287
        %v303 = vsel %vm298, 2.0, %v288
        %v304 = vsel %vm294, 3.75, %v289
        %v305 = vsel %vm295, 3.75, %v290
        %v306 = vsel %vm296, 3.75, %v291
        %v307 = vsel %vm297, 3.75, %v292
        %v308 = vsel %vm298, 3.75, %v293
        %vm309 = vcmp.eq.s32.totalorder %v264, 0
        %vm310 = vcmp.eq.s32.totalorder %v265, 0
        %vm311 = vcmp.eq.s32.totalorder %v266, 0
        %vm312 = vcmp.eq.s32.totalorder %v267, 0
        %vm313 = vcmp.eq.s32.totalorder %v268, 0
        %v314 = vsel %vm309, -1.0471976, 1.5707964
        %v315 = vsel %vm310, -1.0471976, 1.5707964
        %v316 = vsel %vm311, -1.0471976, 1.5707964
        %v317 = vsel %vm312, -1.0471976, 1.5707964
        %v318 = vsel %vm313, -1.0471976, 1.5707964
        %vm319 = vcmp.eq.s32.totalorder %v264, 1
        %vm320 = vcmp.eq.s32.totalorder %v265, 1
        %vm321 = vcmp.eq.s32.totalorder %v266, 1
        %vm322 = vcmp.eq.s32.totalorder %v267, 1
        %vm323 = vcmp.eq.s32.totalorder %v268, 1
        %v324 = vsel %vm319, -0.5235988, %v314
        %v325 = vsel %vm320, -0.5235988, %v315
        %v326 = vsel %vm321, -0.5235988, %v316
        %v327 = vsel %vm322, -0.5235988, %v317
        %v328 = vsel %vm323, -0.5235988, %v318
        %vm329 = vcmp.eq.s32.totalorder %v264, 2
        %vm330 = vcmp.eq.s32.totalorder %v265, 2
        %vm331 = vcmp.eq.s32.totalorder %v266, 2
        %vm332 = vcmp.eq.s32.totalorder %v267, 2
        %vm333 = vcmp.eq.s32.totalorder %v268, 2
        %v334 = vsel %vm329, 0.0, %v324
        %v335 = vsel %vm330, 0.0, %v325
        %v336 = vsel %vm331, 0.0, %v326
        %v337 = vsel %vm332, 0.0, %v327
        %v338 = vsel %vm333, 0.0, %v328
        %vm339 = vcmp.eq.s32.totalorder %v264, 3
        %vm340 = vcmp.eq.s32.totalorder %v265, 3
        %vm341 = vcmp.eq.s32.totalorder %v266, 3
        %vm342 = vcmp.eq.s32.totalorder %v267, 3
        %vm343 = vcmp.eq.s32.totalorder %v268, 3
        %v344 = vsel %vm339, 0.5235988, %v334
        %v345 = vsel %vm340, 0.5235988, %v335
        %v346 = vsel %vm341, 0.5235988, %v336
        %v347 = vsel %vm342, 0.5235988, %v337
        %v348 = vsel %vm343, 0.5235988, %v338
        %vm349 = vcmp.eq.s32.totalorder %v264, 4
        %vm350 = vcmp.eq.s32.totalorder %v265, 4
        %vm351 = vcmp.eq.s32.totalorder %v266, 4
        %vm352 = vcmp.eq.s32.totalorder %v267, 4
        %vm353 = vcmp.eq.s32.totalorder %v268, 4
        %v354 = vsel %vm349, 1.0471976, %v344
        %v355 = vsel %vm350, 1.0471976, %v345
        %v356 = vsel %vm351, 1.0471976, %v346
        %v357 = vsel %vm352, 1.0471976, %v347
        %v358 = vsel %vm353, 1.0471976, %v348
        %v359 = vld [vmem:[%s195] sm:$0xff]
        %v360 = vld [vmem:[%s195 + $0x8] sm:$0xff]
        %v361 = vld [vmem:[%s195 + $0x10] sm:$0xff]
        %v362 = vld [vmem:[%s195 + $0x18] sm:$0xff]
        %v363 = vld [vmem:[%s195 + $0x20] sm:$0xf]
        %v364 = vxor.u32 %v359, 2147483648
        %v365 = vxor.u32 %v360, 2147483648
        %v366 = vxor.u32 %v361, 2147483648
        %v367 = vxor.u32 %v362, 2147483648
        %v368 = vxor.u32 %v363, 2147483648
        %v369 = vmul.f32 %v364, 1.442695
        %v370 = vpow.pop %v369
        %v371 = vmul.f32 %v365, 1.442695
        %v372 = vpow.pop %v371
        %v373 = vmul.f32 %v366, 1.442695
        %v374 = vpow.pop %v373
        %v375 = vmul.f32 %v367, 1.442695
        %v376 = vpow.pop %v375
        %v377 = vmul.f32 %v368, 1.442695
        %v378 = vpow.pop %v377
        %v379 = vadd.f32 %v370, 1.0
        %v380 = vadd.f32 %v372, 1.0
        %v381 = vadd.f32 %v374, 1.0
        %v382 = vadd.f32 %v376, 1.0
        %v383 = vadd.f32 %v378, 1.0
        %v384 = vrcp.pop %v379
        %v385 = vmul.f32 %v379, %v384
        %v386 = vsub.f32 1.0, %v385
        %v387 = vmul.f32 %v384, %v386
        %v388 = vadd.f32 %v384, %v387
        %vm389 = vweird.f32 %v379
        %vm390 = vweird.f32 %v384
        %vm391 = vmor %vm389, %vm390
        %v392 = vsel %vm391, %v384, %v388
        %v393 = vand.u32 2147483647, %v379
        %vm394 = vcmp.eq.f32.partialorder %v393, 8.507059e+37
        %v395 = vand.u32 %v379, 2147483648
        %v396 = vor.u32 1.1754944e-38, %v395
        %v397 = vsel %vm394, %v396, %v392
        %v398 = vmul.f32 1.0, %v397
        %v399 = vrcp.pop %v380
        %v400 = vmul.f32 %v380, %v399
        %v401 = vsub.f32 1.0, %v400
        %v402 = vmul.f32 %v399, %v401
        %v403 = vadd.f32 %v399, %v402
        %vm404 = vweird.f32 %v380
        %vm405 = vweird.f32 %v399
        %vm406 = vmor %vm404, %vm405
        %v407 = vsel %vm406, %v399, %v403
        %v408 = vand.u32 2147483647, %v380
        %vm409 = vcmp.eq.f32.partialorder %v408, 8.507059e+37
        %v410 = vand.u32 %v380, 2147483648
        %v411 = vor.u32 1.1754944e-38, %v410
        %v412 = vsel %vm409, %v411, %v407
        %v413 = vmul.f32 1.0, %v412
        %v414 = vrcp.pop %v381
        %v415 = vmul.f32 %v381, %v414
        %v416 = vsub.f32 1.0, %v415
        %v417 = vmul.f32 %v414, %v416
        %v418 = vadd.f32 %v414, %v417
        %vm419 = vweird.f32 %v381
        %vm420 = vweird.f32 %v414
        %vm421 = vmor %vm419, %vm420
        %v422 = vsel %vm421, %v414, %v418
        %v423 = vand.u32 2147483647, %v381
        %vm424 = vcmp.eq.f32.partialorder %v423, 8.507059e+37
        %v425 = vand.u32 %v381, 2147483648
        %v426 = vor.u32 1.1754944e-38, %v425
        %v427 = vsel %vm424, %v426, %v422
        %v428 = vmul.f32 1.0, %v427
        %v429 = vrcp.pop %v382
        %v430 = vmul.f32 %v382, %v429
        %v431 = vsub.f32 1.0, %v430
        %v432 = vmul.f32 %v429, %v431
        %v433 = vadd.f32 %v429, %v432
        %vm434 = vweird.f32 %v382
        %vm435 = vweird.f32 %v429
        %vm436 = vmor %vm434, %vm435
        %v437 = vsel %vm436, %v429, %v433
        %v438 = vand.u32 2147483647, %v382
        %vm439 = vcmp.eq.f32.partialorder %v438, 8.507059e+37
        %v440 = vand.u32 %v382, 2147483648
        %v441 = vor.u32 1.1754944e-38, %v440
        %v442 = vsel %vm439, %v441, %v437
        %v443 = vmul.f32 1.0, %v442
        %v444 = vrcp.pop %v383
        %v445 = vmul.f32 %v383, %v444
        %v446 = vsub.f32 1.0, %v445
        %v447 = vmul.f32 %v444, %v446
        %v448 = vadd.f32 %v444, %v447
        %vm449 = vweird.f32 %v383
        %vm450 = vweird.f32 %v444
        %vm451 = vmor %vm449, %vm450
        %v452 = vsel %vm451, %v444, %v448
        %v453 = vand.u32 2147483647, %v383
        %vm454 = vcmp.eq.f32.partialorder %v453, 8.507059e+37
        %v455 = vand.u32 %v383, 2147483648
        %v456 = vor.u32 1.1754944e-38, %v455
        %v457 = vsel %vm454, %v456, %v452
        %v458 = vmul.f32 1.0, %v457
        %v459 = vadd.f32 %v398, %v269
        %v460 = vadd.f32 %v413, %v270
        %v461 = vadd.f32 %v428, %v271
        %v462 = vadd.f32 %v443, %v272
        %v463 = vadd.f32 %v458, %v273
        %s464 = scalar_lea.vmem %s195, 40
        %v465 = vld [vmem:[%s464] sm:$0xff]
        %v466 = vld [vmem:[%s464 + $0x8] sm:$0xff]
        %v467 = vld [vmem:[%s464 + $0x10] sm:$0xff]
        %v468 = vld [vmem:[%s464 + $0x18] sm:$0xff]
        %v469 = vld [vmem:[%s464 + $0x20] sm:$0xf]
        %v470 = vxor.u32 %v465, 2147483648
        %v471 = vxor.u32 %v466, 2147483648
        %v472 = vxor.u32 %v467, 2147483648
        %v473 = vxor.u32 %v468, 2147483648
        %v474 = vxor.u32 %v469, 2147483648
        %v475 = vmul.f32 %v470, 1.442695
        %v476 = vpow.pop %v475
        %v477 = vmul.f32 %v471, 1.442695
        %v478 = vpow.pop %v477
        %v479 = vmul.f32 %v472, 1.442695
        %v480 = vpow.pop %v479
        %v481 = vmul.f32 %v473, 1.442695
        %v482 = vpow.pop %v481
        %v483 = vmul.f32 %v474, 1.442695
        %v484 = vpow.pop %v483
        %v485 = vadd.f32 %v476, 1.0
        %v486 = vadd.f32 %v478, 1.0
        %v487 = vadd.f32 %v480, 1.0
        %v488 = vadd.f32 %v482, 1.0
        %v489 = vadd.f32 %v484, 1.0
        %v490 = vrcp.pop %v485
        %v491 = vmul.f32 %v485, %v490
        %v492 = vsub.f32 1.0, %v491
        %v493 = vmul.f32 %v490, %v492
        %v494 = vadd.f32 %v490, %v493
        %vm495 = vweird.f32 %v485
        %vm496 = vweird.f32 %v490
        %vm497 = vmor %vm495, %vm496
        %v498 = vsel %vm497, %v490, %v494
        %v499 = vand.u32 2147483647, %v485
        %vm500 = vcmp.eq.f32.partialorder %v499, 8.507059e+37
        %v501 = vand.u32 %v485, 2147483648
        %v502 = vor.u32 1.1754944e-38, %v501
        %v503 = vsel %vm500, %v502, %v498
        %v504 = vmul.f32 1.0, %v503
        %v505 = vrcp.pop %v486
        %v506 = vmul.f32 %v486, %v505
        %v507 = vsub.f32 1.0, %v506
        %v508 = vmul.f32 %v505, %v507
        %v509 = vadd.f32 %v505, %v508
        %vm510 = vweird.f32 %v486
        %vm511 = vweird.f32 %v505
        %vm512 = vmor %vm510, %vm511
        %v513 = vsel %vm512, %v505, %v509
        %v514 = vand.u32 2147483647, %v486
        %vm515 = vcmp.eq.f32.partialorder %v514, 8.507059e+37
        %v516 = vand.u32 %v486, 2147483648
        %v517 = vor.u32 1.1754944e-38, %v516
        %v518 = vsel %vm515, %v517, %v513
        %v519 = vmul.f32 1.0, %v518
        %v520 = vrcp.pop %v487
        %v521 = vmul.f32 %v487, %v520
        %v522 = vsub.f32 1.0, %v521
        %v523 = vmul.f32 %v520, %v522
        %v524 = vadd.f32 %v520, %v523
        %vm525 = vweird.f32 %v487
        %vm526 = vweird.f32 %v520
        %vm527 = vmor %vm525, %vm526
        %v528 = vsel %vm527, %v520, %v524
        %v529 = vand.u32 2147483647, %v487
        %vm530 = vcmp.eq.f32.partialorder %v529, 8.507059e+37
        %v531 = vand.u32 %v487, 2147483648
        %v532 = vor.u32 1.1754944e-38, %v531
        %v533 = vsel %vm530, %v532, %v528
        %v534 = vmul.f32 1.0, %v533
        %v535 = vrcp.pop %v488
        %v536 = vmul.f32 %v488, %v535
        %v537 = vsub.f32 1.0, %v536
        %v538 = vmul.f32 %v535, %v537
        %v539 = vadd.f32 %v535, %v538
        %vm540 = vweird.f32 %v488
        %vm541 = vweird.f32 %v535
        %vm542 = vmor %vm540, %vm541
        %v543 = vsel %vm542, %v535, %v539
        %v544 = vand.u32 2147483647, %v488
        %vm545 = vcmp.eq.f32.partialorder %v544, 8.507059e+37
        %v546 = vand.u32 %v488, 2147483648
        %v547 = vor.u32 1.1754944e-38, %v546
        %v548 = vsel %vm545, %v547, %v543
        %v549 = vmul.f32 1.0, %v548
        %v550 = vrcp.pop %v489
        %v551 = vmul.f32 %v489, %v550
        %v552 = vsub.f32 1.0, %v551
        %v553 = vmul.f32 %v550, %v552
        %v554 = vadd.f32 %v550, %v553
        %vm555 = vweird.f32 %v489
        %vm556 = vweird.f32 %v550
        %vm557 = vmor %vm555, %vm556
        %v558 = vsel %vm557, %v550, %v554
        %v559 = vand.u32 2147483647, %v489
        %vm560 = vcmp.eq.f32.partialorder %v559, 8.507059e+37
        %v561 = vand.u32 %v489, 2147483648
        %v562 = vor.u32 1.1754944e-38, %v561
        %v563 = vsel %vm560, %v562, %v558
        %v564 = vmul.f32 1.0, %v563
        %v565 = vadd.f32 %v504, %v274
        %v566 = vadd.f32 %v519, %v275
        %v567 = vadd.f32 %v534, %v276
        %v568 = vadd.f32 %v549, %v277
        %v569 = vadd.f32 %v564, %v278
        %s570 = scalar_lea.vmem %s195, 80
        %v571 = vld [vmem:[%s570] sm:$0xff]
        %v572 = vld [vmem:[%s570 + $0x8] sm:$0xff]
        %v573 = vld [vmem:[%s570 + $0x10] sm:$0xff]
        %v574 = vld [vmem:[%s570 + $0x18] sm:$0xff]
        %v575 = vld [vmem:[%s570 + $0x20] sm:$0xf]
        %v576 = vmul.f32 %v571, 1.442695
        %v577 = vpow.pop %v576
        %v578 = vmul.f32 %v572, 1.442695
        %v579 = vpow.pop %v578
        %v580 = vmul.f32 %v573, 1.442695
        %v581 = vpow.pop %v580
        %v582 = vmul.f32 %v574, 1.442695
        %v583 = vpow.pop %v582
        %v584 = vmul.f32 %v575, 1.442695
        %v585 = vpow.pop %v584
        %v586 = vmul.f32 %v577, %v299
        %v587 = vmul.f32 %v579, %v300
        %v588 = vmul.f32 %v581, %v301
        %v589 = vmul.f32 %v583, %v302
        %v590 = vmul.f32 %v585, %v303
        %s591 = scalar_lea.vmem %s195, 120
        %v592 = vld [vmem:[%s591] sm:$0xff]
        %v593 = vld [vmem:[%s591 + $0x8] sm:$0xff]
        %v594 = vld [vmem:[%s591 + $0x10] sm:$0xff]
        %v595 = vld [vmem:[%s591 + $0x18] sm:$0xff]
        %v596 = vld [vmem:[%s591 + $0x20] sm:$0xf]
        %v597 = vmul.f32 %v592, 1.442695
        %v598 = vpow.pop %v597
        %v599 = vmul.f32 %v593, 1.442695
        %v600 = vpow.pop %v599
        %v601 = vmul.f32 %v594, 1.442695
        %v602 = vpow.pop %v601
        %v603 = vmul.f32 %v595, 1.442695
        %v604 = vpow.pop %v603
        %v605 = vmul.f32 %v596, 1.442695
        %v606 = vpow.pop %v605
        %v607 = vmul.f32 %v598, %v304
        %v608 = vmul.f32 %v600, %v305
        %v609 = vmul.f32 %v602, %v306
        %v610 = vmul.f32 %v604, %v307
        %v611 = vmul.f32 %v606, %v308
        %s612 = scalar_lea.vmem %s195, 160
        %v613 = vld [vmem:[%s612] sm:$0xff]
        %v614 = vld [vmem:[%s612 + $0x8] sm:$0xff]
        %v615 = vld [vmem:[%s612 + $0x10] sm:$0xff]
        %v616 = vld [vmem:[%s612 + $0x18] sm:$0xff]
        %v617 = vld [vmem:[%s612 + $0x20] sm:$0xf]
        %v618 = vadd.f32 %v613, %v354
        %v619 = vadd.f32 %v614, %v355
        %v620 = vadd.f32 %v615, %v356
        %v621 = vadd.f32 %v616, %v357
        %v622 = vadd.f32 %v617, %v358
        %v623 = vmul.f32 %v586, 0.5
        %v624 = vmul.f32 %v587, 0.5
        %v625 = vmul.f32 %v588, 0.5
        %v626 = vmul.f32 %v589, 0.5
        %v627 = vmul.f32 %v590, 0.5
        %v628 = vsub.f32 %v459, %v623
        %v629 = vsub.f32 %v460, %v624
        %v630 = vsub.f32 %v461, %v625
        %v631 = vsub.f32 %v462, %v626
        %v632 = vsub.f32 %v463, %v627
        %v633 = vadd.f32 %v459, %v623
        %v634 = vadd.f32 %v460, %v624
        %v635 = vadd.f32 %v461, %v625
        %v636 = vadd.f32 %v462, %v626
        %v637 = vadd.f32 %v463, %v627
        %v638 = vmul.f32 %v607, 0.5
        %v639 = vmul.f32 %v608, 0.5
        %v640 = vmul.f32 %v609, 0.5
        %v641 = vmul.f32 %v610, 0.5
        %v642 = vmul.f32 %v611, 0.5
        %v643 = vsub.f32 %v565, %v638
        %v644 = vsub.f32 %v566, %v639
        %v645 = vsub.f32 %v567, %v640
        %v646 = vsub.f32 %v568, %v641
        %v647 = vsub.f32 %v569, %v642
        %v648 = vadd.f32 %v565, %v638
        %v649 = vadd.f32 %v566, %v639
        %v650 = vadd.f32 %v567, %v640
        %v651 = vadd.f32 %v568, %v641
        %v652 = vadd.f32 %v569, %v642
        %v653 = vmul.f32 %v586, %v607
        %v654 = vmul.f32 %v587, %v608
        %v655 = vmul.f32 %v588, %v609
        %v656 = vmul.f32 %v589, %v610
        %v657 = vmul.f32 %v590, %v611
        %v658 = vand.u32 2147483647, %v618
        %vm659 = vcmp.le.f32.partialorder %v658, 0.7853982
        %vm660 = vcmp.lt.s32.totalorder %v618, 0
        %v661 = vand.u32 %v618, 2139095040
        %v662 = vshrl.u32 %v661, 23
        %v663 = vsub.s32 %v662, 127
        %v664 = vand.u32 2147483647, %v618
        %v665 = vand.u32 %v664, 8388607
        %v666 = vor.u32 %v665, 8388608
        %v667 = vsub.s32 0, %v666
        %v668 = vadd.s32 %v663, 1
        %vm669 = vcmp.gt.s32.totalorder %v668, 0
        %v670 = vsel %vm669, %v668, 0
        %v671 = vshrl.u32 %v670, 5
        %v672 = vand.u32 %v670, 31
        %v673 = vsub.s32 32, %v672
        %v674 = vshrl.u32 683565275, %v673
        %v675 = vshll.u32 683565275, %v672
        %v676 = vshrl.u32 2475754826, %v673
        %v677 = vor.u32 %v675, %v676
        %v678 = vshll.u32 2475754826, %v672
        %v679 = vshrl.u32 2131351028, %v673
        %v680 = vor.u32 %v678, %v679
        %v681 = vshll.u32 2131351028, %v672
        %v682 = vshrl.u32 2102212464, %v673
        %v683 = vor.u32 %v681, %v682
        %v684 = vshll.u32 2102212464, %v672
        %v685 = vshrl.u32 920167782, %v673
        %v686 = vor.u32 %v684, %v685
        %v687 = vshll.u32 920167782, %v672
        %v688 = vshrl.u32 1326507024, %v673
        %v689 = vor.u32 %v687, %v688
        %vm690 = vcmp.lt.s32.totalorder %v671, 1
        %vm691 = vcmp.lt.s32.totalorder %v671, 2
        %vm692 = vcmp.lt.s32.totalorder %v671, 3
        %vm693 = vcmp.lt.s32.totalorder %v671, 4
        %v694 = vsel %vm690, %v674, %v677
        %v695 = vsel %vm693, %v683, 2102212464
        %v696 = vsel %vm692, %v680, %v695
        %v697 = vsel %vm691, %v694, %v696
        %v698 = vsel %vm690, %v677, %v680
        %v699 = vsel %vm693, %v686, 920167782
        %v700 = vsel %vm692, %v683, %v699
        %v701 = vsel %vm691, %v698, %v700
        %v702 = vsel %vm690, %v680, %v683
        %v703 = vsel %vm693, %v689, 1326507024
        %v704 = vsel %vm692, %v686, %v703
        %v705 = vsel %vm691, %v702, %v704
        %v706 = vshll.u32 %v666, 8
        %v707 = vand.u32 %v706, 65535
        %v708 = vshrl.u32 %v706, 16
        %v709 = vand.u32 %v705, 65535
        %v710 = vshrl.u32 %v705, 16
        %v711 = vmul.u32 %v707, %v709
        %v712 = vmul.u32 %v707, %v710
        %v713 = vmul.u32 %v708, %v709
        %v714 = vmul.u32 %v708, %v710
        %v715 = vshll.u32 %v712, 16
        %v716 = vshrl.u32 %v712, 16
        %v717 = vshll.u32 %v713, 16
        %v718 = vshrl.u32 %v713, 16
        %vm719 = vc.u32 %v711, %v715
        %v720 = vsel %vm719, 1, 0
        %v721 = vadd.s32 %v711, %v715
        %v722 = vadd.s32 %v714, %v720
        %vm723 = vc.u32 %v721, %v717
        %v724 = vsel %vm723, 1, 0
        %v725 = vadd.s32 %v721, %v717
        %v726 = vadd.s32 %v722, %v724
        %v727 = vadd.s32 %v726, %v716
        %v728 = vadd.s32 %v727, %v718
        %v729 = vand.u32 %v706, 65535
        %v730 = vshrl.u32 %v706, 16
        %v731 = vand.u32 %v701, 65535
        %v732 = vshrl.u32 %v701, 16
        %v733 = vmul.u32 %v729, %v731
        %v734 = vmul.u32 %v729, %v732
        %v735 = vmul.u32 %v730, %v731
        %v736 = vmul.u32 %v730, %v732
        %v737 = vshll.u32 %v734, 16
        %v738 = vshrl.u32 %v734, 16
        %v739 = vshll.u32 %v735, 16
        %v740 = vshrl.u32 %v735, 16
        %vm741 = vc.u32 %v733, %v737
        %v742 = vsel %vm741, 1, 0
        %v743 = vadd.s32 %v733, %v737
        %v744 = vadd.s32 %v736, %v742
        %vm745 = vc.u32 %v743, %v739
        %v746 = vsel %vm745, 1, 0
        %v747 = vadd.s32 %v743, %v739
        %v748 = vadd.s32 %v744, %v746
        %v749 = vadd.s32 %v748, %v738
        %v750 = vadd.s32 %v749, %v740
        %v751 = vmul.u32 %v706, %v697
        %v752 = vadd.s32 %v728, %v747
        %vm753 = vc.u32 %v728, %v747
        %v754 = vadd.s32 %v750, 1
        %v755 = vsel %vm753, %v754, %v750
        %v756 = vadd.s32 %v751, %v755
        %v757 = vadd.s32 %v756, 536870912
        %v758 = vshrl.u32 %v757, 30
        %v759 = vshll.u32 %v758, 30
        %v760 = vsub.s32 %v756, %v759
        %vm761 = vcmp.lt.s32.totalorder %v760, 0
        %v762 = vsub.s32 0, %v760
        %v763 = vsel %vm761, %v762, %v760
        %v764 = vclz %v763
        %v765 = vsub.s32 %v764, 2
        %vm766 = vcmp.gt.s32.totalorder 0, %v765
        %v767 = vsel %vm766, 0, %v765
        %v768 = vsub.s32 32, %v767
        %v769 = vshll.u32 %v760, %v767
        %v770 = vshrl.u32 %v752, %v768
        %v771 = vor.u32 %v769, %v770
        %v772 = vsub.s32 4294967266, %v767
        %v773 = vadd.s32 %v772, 127
        %v774 = vshll.u32 %v773, 23
        %v775 = vor.u32 4788187, %v774
        %v776 = vand.u32 2147483647, %v775
        %v778 = vcvt.s32.f32 %v771
        %v779 = vmul.f32 %v778, %v776
        %v780 = vxor.u32 %v779, 2147483648
        %v781 = vsel %vm660, %v780, %v779
        %v782 = vsub.s32 4, %v758
        %v783 = vsel %vm660, %v782, %v758
        %v784 = vsel %vm659, %v618, %v781
        %v785 = vsel %vm659, 0, %v783
        %v786 = vmul.f32 %v784, %v784
        %v787 = vmul.f32 %v786, -0.001358992
        %v788 = vadd.f32 %v787, 0.041655596
        %v789 = vmul.f32 %v786, %v788
        %v790 = vadd.f32 %v789, -0.4999988
        %v791 = vmul.f32 %v786, %v790
        %v792 = vadd.f32 1.0, %v791
        %v793 = vmul.f32 %v784, %v784
        %v794 = vmul.f32 %v793, -0.00019511016
        %v795 = vadd.f32 %v794, 0.008332121
        %v796 = vmul.f32 %v793, %v795
        %v797 = vadd.f32 %v796, -0.16666654
        %v798 = vmul.f32 %v793, %v797
        %v799 = vadd.f32 %v798, 1.0
        %v800 = vmul.f32 %v799, %v784
        %vm801 = vweird.f32 %v618
        %v802 = vand.u32 %v785, 3
        %vm803 = vcmp.lt.s32.totalorder %v802, 2
        %vm804 = vcmp.eq.s32.totalorder %v802, 0
        %v805 = vxor.u32 %v800, 2147483648
        %v806 = vsel %vm804, %v792, %v805
        %vm807 = vcmp.eq.s32.totalorder %v802, 2
        %v808 = vxor.u32 %v792, 2147483648
        %v809 = vsel %vm807, %v808, %v800
        %v810 = vsel %vm803, %v806, %v809
        %v811 = vsel %vm801, nan, %v810
        %v812 = vand.u32 2147483647, %v619
        %vm813 = vcmp.le.f32.partialorder %v812, 0.7853982
        %vm814 = vcmp.lt.s32.totalorder %v619, 0
        %v815 = vand.u32 %v619, 2139095040
        %v816 = vshrl.u32 %v815, 23
        %v817 = vsub.s32 %v816, 127
        %v818 = vand.u32 2147483647, %v619
        %v819 = vand.u32 %v818, 8388607
        %v820 = vor.u32 %v819, 8388608
        %v821 = vsub.s32 0, %v820
        %v822 = vadd.s32 %v817, 1
        %vm823 = vcmp.gt.s32.totalorder %v822, 0
        %v824 = vsel %vm823, %v822, 0
        %v825 = vshrl.u32 %v824, 5
        %v826 = vand.u32 %v824, 31
        %v827 = vsub.s32 32, %v826
        %v828 = vshrl.u32 683565275, %v827
        %v829 = vshll.u32 683565275, %v826
        %v830 = vshrl.u32 2475754826, %v827
        %v831 = vor.u32 %v829, %v830
        %v832 = vshll.u32 2475754826, %v826
        %v833 = vshrl.u32 2131351028, %v827
        %v834 = vor.u32 %v832, %v833
        %v835 = vshll.u32 2131351028, %v826
        %v836 = vshrl.u32 2102212464, %v827
        %v837 = vor.u32 %v835, %v836
        %v838 = vshll.u32 2102212464, %v826
        %v839 = vshrl.u32 920167782, %v827
        %v840 = vor.u32 %v838, %v839
        %v841 = vshll.u32 920167782, %v826
        %v842 = vshrl.u32 1326507024, %v827
        %v843 = vor.u32 %v841, %v842
        %vm844 = vcmp.lt.s32.totalorder %v825, 1
        %vm845 = vcmp.lt.s32.totalorder %v825, 2
        %vm846 = vcmp.lt.s32.totalorder %v825, 3
        %vm847 = vcmp.lt.s32.totalorder %v825, 4
        %v848 = vsel %vm844, %v828, %v831
        %v849 = vsel %vm847, %v837, 2102212464
        %v850 = vsel %vm846, %v834, %v849
        %v851 = vsel %vm845, %v848, %v850
        %v852 = vsel %vm844, %v831, %v834
        %v853 = vsel %vm847, %v840, 920167782
        %v854 = vsel %vm846, %v837, %v853
        %v855 = vsel %vm845, %v852, %v854
        %v856 = vsel %vm844, %v834, %v837
        %v857 = vsel %vm847, %v843, 1326507024
        %v858 = vsel %vm846, %v840, %v857
        %v859 = vsel %vm845, %v856, %v858
        %v860 = vshll.u32 %v820, 8
        %v861 = vand.u32 %v860, 65535
        %v862 = vshrl.u32 %v860, 16
        %v863 = vand.u32 %v859, 65535
        %v864 = vshrl.u32 %v859, 16
        %v865 = vmul.u32 %v861, %v863
        %v866 = vmul.u32 %v861, %v864
        %v867 = vmul.u32 %v862, %v863
        %v868 = vmul.u32 %v862, %v864
        %v869 = vshll.u32 %v866, 16
        %v870 = vshrl.u32 %v866, 16
        %v871 = vshll.u32 %v867, 16
        %v872 = vshrl.u32 %v867, 16
        %vm873 = vc.u32 %v865, %v869
        %v874 = vsel %vm873, 1, 0
        %v875 = vadd.s32 %v865, %v869
        %v876 = vadd.s32 %v868, %v874
        %vm877 = vc.u32 %v875, %v871
        %v878 = vsel %vm877, 1, 0
        %v879 = vadd.s32 %v875, %v871
        %v880 = vadd.s32 %v876, %v878
        %v881 = vadd.s32 %v880, %v870
        %v882 = vadd.s32 %v881, %v872
        %v883 = vand.u32 %v860, 65535
        %v884 = vshrl.u32 %v860, 16
        %v885 = vand.u32 %v855, 65535
        %v886 = vshrl.u32 %v855, 16
        %v887 = vmul.u32 %v883, %v885
        %v888 = vmul.u32 %v883, %v886
        %v889 = vmul.u32 %v884, %v885
        %v890 = vmul.u32 %v884, %v886
        %v891 = vshll.u32 %v888, 16
        %v892 = vshrl.u32 %v888, 16
        %v893 = vshll.u32 %v889, 16
        %v894 = vshrl.u32 %v889, 16
        %vm895 = vc.u32 %v887, %v891
        %v896 = vsel %vm895, 1, 0
        %v897 = vadd.s32 %v887, %v891
        %v898 = vadd.s32 %v890, %v896
        %vm899 = vc.u32 %v897, %v893
        %v900 = vsel %vm899, 1, 0
        %v901 = vadd.s32 %v897, %v893
        %v902 = vadd.s32 %v898, %v900
        %v903 = vadd.s32 %v902, %v892
        %v904 = vadd.s32 %v903, %v894
        %v905 = vmul.u32 %v860, %v851
        %v906 = vadd.s32 %v882, %v901
        %vm907 = vc.u32 %v882, %v901
        %v908 = vadd.s32 %v904, 1
        %v909 = vsel %vm907, %v908, %v904
        %v910 = vadd.s32 %v905, %v909
        %v911 = vadd.s32 %v910, 536870912
        %v912 = vshrl.u32 %v911, 30
        %v913 = vshll.u32 %v912, 30
        %v914 = vsub.s32 %v910, %v913
        %vm915 = vcmp.lt.s32.totalorder %v914, 0
        %v916 = vsub.s32 0, %v914
        %v917 = vsel %vm915, %v916, %v914
        %v918 = vclz %v917
        %v919 = vsub.s32 %v918, 2
        %vm920 = vcmp.gt.s32.totalorder 0, %v919
        %v921 = vsel %vm920, 0, %v919
        %v922 = vsub.s32 32, %v921
        %v923 = vshll.u32 %v914, %v921
        %v924 = vshrl.u32 %v906, %v922
        %v925 = vor.u32 %v923, %v924
        %v926 = vsub.s32 4294967266, %v921
        %v927 = vadd.s32 %v926, 127
        %v928 = vshll.u32 %v927, 23
        %v929 = vor.u32 4788187, %v928
        %v930 = vand.u32 2147483647, %v929
        %v932 = vcvt.s32.f32 %v925
        %v933 = vmul.f32 %v932, %v930
        %v934 = vxor.u32 %v933, 2147483648
        %v935 = vsel %vm814, %v934, %v933
        %v936 = vsub.s32 4, %v912
        %v937 = vsel %vm814, %v936, %v912
        %v938 = vsel %vm813, %v619, %v935
        %v939 = vsel %vm813, 0, %v937
        %v940 = vmul.f32 %v938, %v938
        %v941 = vmul.f32 %v940, -0.001358992
        %v942 = vadd.f32 %v941, 0.041655596
        %v943 = vmul.f32 %v940, %v942
        %v944 = vadd.f32 %v943, -0.4999988
        %v945 = vmul.f32 %v940, %v944
        %v946 = vadd.f32 1.0, %v945
        %v947 = vmul.f32 %v938, %v938
        %v948 = vmul.f32 %v947, -0.00019511016
        %v949 = vadd.f32 %v948, 0.008332121
        %v950 = vmul.f32 %v947, %v949
        %v951 = vadd.f32 %v950, -0.16666654
        %v952 = vmul.f32 %v947, %v951
        %v953 = vadd.f32 %v952, 1.0
        %v954 = vmul.f32 %v953, %v938
        %vm955 = vweird.f32 %v619
        %v956 = vand.u32 %v939, 3
        %vm957 = vcmp.lt.s32.totalorder %v956, 2
        %vm958 = vcmp.eq.s32.totalorder %v956, 0
        %v959 = vxor.u32 %v954, 2147483648
        %v960 = vsel %vm958, %v946, %v959
        %vm961 = vcmp.eq.s32.totalorder %v956, 2
        %v962 = vxor.u32 %v946, 2147483648
        %v963 = vsel %vm961, %v962, %v954
        %v964 = vsel %vm957, %v960, %v963
        %v965 = vsel %vm955, nan, %v964
        %v966 = vand.u32 2147483647, %v620
        %vm967 = vcmp.le.f32.partialorder %v966, 0.7853982
        %vm968 = vcmp.lt.s32.totalorder %v620, 0
        %v969 = vand.u32 %v620, 2139095040
        %v970 = vshrl.u32 %v969, 23
        %v971 = vsub.s32 %v970, 127
        %v972 = vand.u32 2147483647, %v620
        %v973 = vand.u32 %v972, 8388607
        %v974 = vor.u32 %v973, 8388608
        %v975 = vsub.s32 0, %v974
        %v976 = vadd.s32 %v971, 1
        %vm977 = vcmp.gt.s32.totalorder %v976, 0
        %v978 = vsel %vm977, %v976, 0
        %v979 = vshrl.u32 %v978, 5
        %v980 = vand.u32 %v978, 31
        %v981 = vsub.s32 32, %v980
        %v982 = vshrl.u32 683565275, %v981
        %v983 = vshll.u32 683565275, %v980
        %v984 = vshrl.u32 2475754826, %v981
        %v985 = vor.u32 %v983, %v984
        %v986 = vshll.u32 2475754826, %v980
        %v987 = vshrl.u32 2131351028, %v981
        %v988 = vor.u32 %v986, %v987
        %v989 = vshll.u32 2131351028, %v980
        %v990 = vshrl.u32 2102212464, %v981
        %v991 = vor.u32 %v989, %v990
        %v992 = vshll.u32 2102212464, %v980
        %v993 = vshrl.u32 920167782, %v981
        %v994 = vor.u32 %v992, %v993
        %v995 = vshll.u32 920167782, %v980
        %v996 = vshrl.u32 1326507024, %v981
        %v997 = vor.u32 %v995, %v996
        %vm998 = vcmp.lt.s32.totalorder %v979, 1
        %vm999 = vcmp.lt.s32.totalorder %v979, 2
        %vm1000 = vcmp.lt.s32.totalorder %v979, 3
        %vm1001 = vcmp.lt.s32.totalorder %v979, 4
        %v1002 = vsel %vm998, %v982, %v985
        %v1003 = vsel %vm1001, %v991, 2102212464
        %v1004 = vsel %vm1000, %v988, %v1003
        %v1005 = vsel %vm999, %v1002, %v1004
        %v1006 = vsel %vm998, %v985, %v988
        %v1007 = vsel %vm1001, %v994, 920167782
        %v1008 = vsel %vm1000, %v991, %v1007
        %v1009 = vsel %vm999, %v1006, %v1008
        %v1010 = vsel %vm998, %v988, %v991
        %v1011 = vsel %vm1001, %v997, 1326507024
        %v1012 = vsel %vm1000, %v994, %v1011
        %v1013 = vsel %vm999, %v1010, %v1012
        %v1014 = vshll.u32 %v974, 8
        %v1015 = vand.u32 %v1014, 65535
        %v1016 = vshrl.u32 %v1014, 16
        %v1017 = vand.u32 %v1013, 65535
        %v1018 = vshrl.u32 %v1013, 16
        %v1019 = vmul.u32 %v1015, %v1017
        %v1020 = vmul.u32 %v1015, %v1018
        %v1021 = vmul.u32 %v1016, %v1017
        %v1022 = vmul.u32 %v1016, %v1018
        %v1023 = vshll.u32 %v1020, 16
        %v1024 = vshrl.u32 %v1020, 16
        %v1025 = vshll.u32 %v1021, 16
        %v1026 = vshrl.u32 %v1021, 16
        %vm1027 = vc.u32 %v1019, %v1023
        %v1028 = vsel %vm1027, 1, 0
        %v1029 = vadd.s32 %v1019, %v1023
        %v1030 = vadd.s32 %v1022, %v1028
        %vm1031 = vc.u32 %v1029, %v1025
        %v1032 = vsel %vm1031, 1, 0
        %v1033 = vadd.s32 %v1029, %v1025
        %v1034 = vadd.s32 %v1030, %v1032
        %v1035 = vadd.s32 %v1034, %v1024
        %v1036 = vadd.s32 %v1035, %v1026
        %v1037 = vand.u32 %v1014, 65535
        %v1038 = vshrl.u32 %v1014, 16
        %v1039 = vand.u32 %v1009, 65535
        %v1040 = vshrl.u32 %v1009, 16
        %v1041 = vmul.u32 %v1037, %v1039
        %v1042 = vmul.u32 %v1037, %v1040
        %v1043 = vmul.u32 %v1038, %v1039
        %v1044 = vmul.u32 %v1038, %v1040
        %v1045 = vshll.u32 %v1042, 16
        %v1046 = vshrl.u32 %v1042, 16
        %v1047 = vshll.u32 %v1043, 16
        %v1048 = vshrl.u32 %v1043, 16
        %vm1049 = vc.u32 %v1041, %v1045
        %v1050 = vsel %vm1049, 1, 0
        %v1051 = vadd.s32 %v1041, %v1045
        %v1052 = vadd.s32 %v1044, %v1050
        %vm1053 = vc.u32 %v1051, %v1047
        %v1054 = vsel %vm1053, 1, 0
        %v1055 = vadd.s32 %v1051, %v1047
        %v1056 = vadd.s32 %v1052, %v1054
        %v1057 = vadd.s32 %v1056, %v1046
        %v1058 = vadd.s32 %v1057, %v1048
        %v1059 = vmul.u32 %v1014, %v1005
        %v1060 = vadd.s32 %v1036, %v1055
        %vm1061 = vc.u32 %v1036, %v1055
        %v1062 = vadd.s32 %v1058, 1
        %v1063 = vsel %vm1061, %v1062, %v1058
        %v1064 = vadd.s32 %v1059, %v1063
        %v1065 = vadd.s32 %v1064, 536870912
        %v1066 = vshrl.u32 %v1065, 30
        %v1067 = vshll.u32 %v1066, 30
        %v1068 = vsub.s32 %v1064, %v1067
        %vm1069 = vcmp.lt.s32.totalorder %v1068, 0
        %v1070 = vsub.s32 0, %v1068
        %v1071 = vsel %vm1069, %v1070, %v1068
        %v1072 = vclz %v1071
        %v1073 = vsub.s32 %v1072, 2
        %vm1074 = vcmp.gt.s32.totalorder 0, %v1073
        %v1075 = vsel %vm1074, 0, %v1073
        %v1076 = vsub.s32 32, %v1075
        %v1077 = vshll.u32 %v1068, %v1075
        %v1078 = vshrl.u32 %v1060, %v1076
        %v1079 = vor.u32 %v1077, %v1078
        %v1080 = vsub.s32 4294967266, %v1075
        %v1081 = vadd.s32 %v1080, 127
        %v1082 = vshll.u32 %v1081, 23
        %v1083 = vor.u32 4788187, %v1082
        %v1084 = vand.u32 2147483647, %v1083
        %v1086 = vcvt.s32.f32 %v1079
        %v1087 = vmul.f32 %v1086, %v1084
        %v1088 = vxor.u32 %v1087, 2147483648
        %v1089 = vsel %vm968, %v1088, %v1087
        %v1090 = vsub.s32 4, %v1066
        %v1091 = vsel %vm968, %v1090, %v1066
        %v1092 = vsel %vm967, %v620, %v1089
        %v1093 = vsel %vm967, 0, %v1091
        %v1094 = vmul.f32 %v1092, %v1092
        %v1095 = vmul.f32 %v1094, -0.001358992
        %v1096 = vadd.f32 %v1095, 0.041655596
        %v1097 = vmul.f32 %v1094, %v1096
        %v1098 = vadd.f32 %v1097, -0.4999988
        %v1099 = vmul.f32 %v1094, %v1098
        %v1100 = vadd.f32 1.0, %v1099
        %v1101 = vmul.f32 %v1092, %v1092
        %v1102 = vmul.f32 %v1101, -0.00019511016
        %v1103 = vadd.f32 %v1102, 0.008332121
        %v1104 = vmul.f32 %v1101, %v1103
        %v1105 = vadd.f32 %v1104, -0.16666654
        %v1106 = vmul.f32 %v1101, %v1105
        %v1107 = vadd.f32 %v1106, 1.0
        %v1108 = vmul.f32 %v1107, %v1092
        %vm1109 = vweird.f32 %v620
        %v1110 = vand.u32 %v1093, 3
        %vm1111 = vcmp.lt.s32.totalorder %v1110, 2
        %vm1112 = vcmp.eq.s32.totalorder %v1110, 0
        %v1113 = vxor.u32 %v1108, 2147483648
        %v1114 = vsel %vm1112, %v1100, %v1113
        %vm1115 = vcmp.eq.s32.totalorder %v1110, 2
        %v1116 = vxor.u32 %v1100, 2147483648
        %v1117 = vsel %vm1115, %v1116, %v1108
        %v1118 = vsel %vm1111, %v1114, %v1117
        %v1119 = vsel %vm1109, nan, %v1118
        %v1120 = vand.u32 2147483647, %v621
        %vm1121 = vcmp.le.f32.partialorder %v1120, 0.7853982
        %vm1122 = vcmp.lt.s32.totalorder %v621, 0
        %v1123 = vand.u32 %v621, 2139095040
        %v1124 = vshrl.u32 %v1123, 23
        %v1125 = vsub.s32 %v1124, 127
        %v1126 = vand.u32 2147483647, %v621
        %v1127 = vand.u32 %v1126, 8388607
        %v1128 = vor.u32 %v1127, 8388608
        %v1129 = vsub.s32 0, %v1128
        %v1130 = vadd.s32 %v1125, 1
        %vm1131 = vcmp.gt.s32.totalorder %v1130, 0
        %v1132 = vsel %vm1131, %v1130, 0
        %v1133 = vshrl.u32 %v1132, 5
        %v1134 = vand.u32 %v1132, 31
        %v1135 = vsub.s32 32, %v1134
        %v1136 = vshrl.u32 683565275, %v1135
        %v1137 = vshll.u32 683565275, %v1134
        %v1138 = vshrl.u32 2475754826, %v1135
        %v1139 = vor.u32 %v1137, %v1138
        %v1140 = vshll.u32 2475754826, %v1134
        %v1141 = vshrl.u32 2131351028, %v1135
        %v1142 = vor.u32 %v1140, %v1141
        %v1143 = vshll.u32 2131351028, %v1134
        %v1144 = vshrl.u32 2102212464, %v1135
        %v1145 = vor.u32 %v1143, %v1144
        %v1146 = vshll.u32 2102212464, %v1134
        %v1147 = vshrl.u32 920167782, %v1135
        %v1148 = vor.u32 %v1146, %v1147
        %v1149 = vshll.u32 920167782, %v1134
        %v1150 = vshrl.u32 1326507024, %v1135
        %v1151 = vor.u32 %v1149, %v1150
        %vm1152 = vcmp.lt.s32.totalorder %v1133, 1
        %vm1153 = vcmp.lt.s32.totalorder %v1133, 2
        %vm1154 = vcmp.lt.s32.totalorder %v1133, 3
        %vm1155 = vcmp.lt.s32.totalorder %v1133, 4
        %v1156 = vsel %vm1152, %v1136, %v1139
        %v1157 = vsel %vm1155, %v1145, 2102212464
        %v1158 = vsel %vm1154, %v1142, %v1157
        %v1159 = vsel %vm1153, %v1156, %v1158
        %v1160 = vsel %vm1152, %v1139, %v1142
        %v1161 = vsel %vm1155, %v1148, 920167782
        %v1162 = vsel %vm1154, %v1145, %v1161
        %v1163 = vsel %vm1153, %v1160, %v1162
        %v1164 = vsel %vm1152, %v1142, %v1145
        %v1165 = vsel %vm1155, %v1151, 1326507024
        %v1166 = vsel %vm1154, %v1148, %v1165
        %v1167 = vsel %vm1153, %v1164, %v1166
        %v1168 = vshll.u32 %v1128, 8
        %v1169 = vand.u32 %v1168, 65535
        %v1170 = vshrl.u32 %v1168, 16
        %v1171 = vand.u32 %v1167, 65535
        %v1172 = vshrl.u32 %v1167, 16
        %v1173 = vmul.u32 %v1169, %v1171
        %v1174 = vmul.u32 %v1169, %v1172
        %v1175 = vmul.u32 %v1170, %v1171
        %v1176 = vmul.u32 %v1170, %v1172
        %v1177 = vshll.u32 %v1174, 16
        %v1178 = vshrl.u32 %v1174, 16
        %v1179 = vshll.u32 %v1175, 16
        %v1180 = vshrl.u32 %v1175, 16
        %vm1181 = vc.u32 %v1173, %v1177
        %v1182 = vsel %vm1181, 1, 0
        %v1183 = vadd.s32 %v1173, %v1177
        %v1184 = vadd.s32 %v1176, %v1182
        %vm1185 = vc.u32 %v1183, %v1179
        %v1186 = vsel %vm1185, 1, 0
        %v1187 = vadd.s32 %v1183, %v1179
        %v1188 = vadd.s32 %v1184, %v1186
        %v1189 = vadd.s32 %v1188, %v1178
        %v1190 = vadd.s32 %v1189, %v1180
        %v1191 = vand.u32 %v1168, 65535
        %v1192 = vshrl.u32 %v1168, 16
        %v1193 = vand.u32 %v1163, 65535
        %v1194 = vshrl.u32 %v1163, 16
        %v1195 = vmul.u32 %v1191, %v1193
        %v1196 = vmul.u32 %v1191, %v1194
        %v1197 = vmul.u32 %v1192, %v1193
        %v1198 = vmul.u32 %v1192, %v1194
        %v1199 = vshll.u32 %v1196, 16
        %v1200 = vshrl.u32 %v1196, 16
        %v1201 = vshll.u32 %v1197, 16
        %v1202 = vshrl.u32 %v1197, 16
        %vm1203 = vc.u32 %v1195, %v1199
        %v1204 = vsel %vm1203, 1, 0
        %v1205 = vadd.s32 %v1195, %v1199
        %v1206 = vadd.s32 %v1198, %v1204
        %vm1207 = vc.u32 %v1205, %v1201
        %v1208 = vsel %vm1207, 1, 0
        %v1209 = vadd.s32 %v1205, %v1201
        %v1210 = vadd.s32 %v1206, %v1208
        %v1211 = vadd.s32 %v1210, %v1200
        %v1212 = vadd.s32 %v1211, %v1202
        %v1213 = vmul.u32 %v1168, %v1159
        %v1214 = vadd.s32 %v1190, %v1209
        %vm1215 = vc.u32 %v1190, %v1209
        %v1216 = vadd.s32 %v1212, 1
        %v1217 = vsel %vm1215, %v1216, %v1212
        %v1218 = vadd.s32 %v1213, %v1217
        %v1219 = vadd.s32 %v1218, 536870912
        %v1220 = vshrl.u32 %v1219, 30
        %v1221 = vshll.u32 %v1220, 30
        %v1222 = vsub.s32 %v1218, %v1221
        %vm1223 = vcmp.lt.s32.totalorder %v1222, 0
        %v1224 = vsub.s32 0, %v1222
        %v1225 = vsel %vm1223, %v1224, %v1222
        %v1226 = vclz %v1225
        %v1227 = vsub.s32 %v1226, 2
        %vm1228 = vcmp.gt.s32.totalorder 0, %v1227
        %v1229 = vsel %vm1228, 0, %v1227
        %v1230 = vsub.s32 32, %v1229
        %v1231 = vshll.u32 %v1222, %v1229
        %v1232 = vshrl.u32 %v1214, %v1230
        %v1233 = vor.u32 %v1231, %v1232
        %v1234 = vsub.s32 4294967266, %v1229
        %v1235 = vadd.s32 %v1234, 127
        %v1236 = vshll.u32 %v1235, 23
        %v1237 = vor.u32 4788187, %v1236
        %v1238 = vand.u32 2147483647, %v1237
        %v1240 = vcvt.s32.f32 %v1233
        %v1241 = vmul.f32 %v1240, %v1238
        %v1242 = vxor.u32 %v1241, 2147483648
        %v1243 = vsel %vm1122, %v1242, %v1241
        %v1244 = vsub.s32 4, %v1220
        %v1245 = vsel %vm1122, %v1244, %v1220
        %v1246 = vsel %vm1121, %v621, %v1243
        %v1247 = vsel %vm1121, 0, %v1245
        %v1248 = vmul.f32 %v1246, %v1246
        %v1249 = vmul.f32 %v1248, -0.001358992
        %v1250 = vadd.f32 %v1249, 0.041655596
        %v1251 = vmul.f32 %v1248, %v1250
        %v1252 = vadd.f32 %v1251, -0.4999988
        %v1253 = vmul.f32 %v1248, %v1252
        %v1254 = vadd.f32 1.0, %v1253
        %v1255 = vmul.f32 %v1246, %v1246
        %v1256 = vmul.f32 %v1255, -0.00019511016
        %v1257 = vadd.f32 %v1256, 0.008332121
        %v1258 = vmul.f32 %v1255, %v1257
        %v1259 = vadd.f32 %v1258, -0.16666654
        %v1260 = vmul.f32 %v1255, %v1259
        %v1261 = vadd.f32 %v1260, 1.0
        %v1262 = vmul.f32 %v1261, %v1246
        %vm1263 = vweird.f32 %v621
        %v1264 = vand.u32 %v1247, 3
        %vm1265 = vcmp.lt.s32.totalorder %v1264, 2
        %vm1266 = vcmp.eq.s32.totalorder %v1264, 0
        %v1267 = vxor.u32 %v1262, 2147483648
        %v1268 = vsel %vm1266, %v1254, %v1267
        %vm1269 = vcmp.eq.s32.totalorder %v1264, 2
        %v1270 = vxor.u32 %v1254, 2147483648
        %v1271 = vsel %vm1269, %v1270, %v1262
        %v1272 = vsel %vm1265, %v1268, %v1271
        %v1273 = vsel %vm1263, nan, %v1272
        %v1274 = vand.u32 2147483647, %v622
        %vm1275 = vcmp.le.f32.partialorder %v1274, 0.7853982
        %vm1276 = vcmp.lt.s32.totalorder %v622, 0
        %v1277 = vand.u32 %v622, 2139095040
        %v1278 = vshrl.u32 %v1277, 23
        %v1279 = vsub.s32 %v1278, 127
        %v1280 = vand.u32 2147483647, %v622
        %v1281 = vand.u32 %v1280, 8388607
        %v1282 = vor.u32 %v1281, 8388608
        %v1283 = vsub.s32 0, %v1282
        %v1284 = vadd.s32 %v1279, 1
        %vm1285 = vcmp.gt.s32.totalorder %v1284, 0
        %v1286 = vsel %vm1285, %v1284, 0
        %v1287 = vshrl.u32 %v1286, 5
        %v1288 = vand.u32 %v1286, 31
        %v1289 = vsub.s32 32, %v1288
        %v1290 = vshrl.u32 683565275, %v1289
        %v1291 = vshll.u32 683565275, %v1288
        %v1292 = vshrl.u32 2475754826, %v1289
        %v1293 = vor.u32 %v1291, %v1292
        %v1294 = vshll.u32 2475754826, %v1288
        %v1295 = vshrl.u32 2131351028, %v1289
        %v1296 = vor.u32 %v1294, %v1295
        %v1297 = vshll.u32 2131351028, %v1288
        %v1298 = vshrl.u32 2102212464, %v1289
        %v1299 = vor.u32 %v1297, %v1298
        %v1300 = vshll.u32 2102212464, %v1288
        %v1301 = vshrl.u32 920167782, %v1289
        %v1302 = vor.u32 %v1300, %v1301
        %v1303 = vshll.u32 920167782, %v1288
        %v1304 = vshrl.u32 1326507024, %v1289
        %v1305 = vor.u32 %v1303, %v1304
        %vm1306 = vcmp.lt.s32.totalorder %v1287, 1
        %vm1307 = vcmp.lt.s32.totalorder %v1287, 2
        %vm1308 = vcmp.lt.s32.totalorder %v1287, 3
        %vm1309 = vcmp.lt.s32.totalorder %v1287, 4
        %v1310 = vsel %vm1306, %v1290, %v1293
        %v1311 = vsel %vm1309, %v1299, 2102212464
        %v1312 = vsel %vm1308, %v1296, %v1311
        %v1313 = vsel %vm1307, %v1310, %v1312
        %v1314 = vsel %vm1306, %v1293, %v1296
        %v1315 = vsel %vm1309, %v1302, 920167782
        %v1316 = vsel %vm1308, %v1299, %v1315
        %v1317 = vsel %vm1307, %v1314, %v1316
        %v1318 = vsel %vm1306, %v1296, %v1299
        %v1319 = vsel %vm1309, %v1305, 1326507024
        %v1320 = vsel %vm1308, %v1302, %v1319
        %v1321 = vsel %vm1307, %v1318, %v1320
        %v1322 = vshll.u32 %v1282, 8
        %v1323 = vand.u32 %v1322, 65535
        %v1324 = vshrl.u32 %v1322, 16
        %v1325 = vand.u32 %v1321, 65535
        %v1326 = vshrl.u32 %v1321, 16
        %v1327 = vmul.u32 %v1323, %v1325
        %v1328 = vmul.u32 %v1323, %v1326
        %v1329 = vmul.u32 %v1324, %v1325
        %v1330 = vmul.u32 %v1324, %v1326
        %v1331 = vshll.u32 %v1328, 16
        %v1332 = vshrl.u32 %v1328, 16
        %v1333 = vshll.u32 %v1329, 16
        %v1334 = vshrl.u32 %v1329, 16
        %vm1335 = vc.u32 %v1327, %v1331
        %v1336 = vsel %vm1335, 1, 0
        %v1337 = vadd.s32 %v1327, %v1331
        %v1338 = vadd.s32 %v1330, %v1336
        %vm1339 = vc.u32 %v1337, %v1333
        %v1340 = vsel %vm1339, 1, 0
        %v1341 = vadd.s32 %v1337, %v1333
        %v1342 = vadd.s32 %v1338, %v1340
        %v1343 = vadd.s32 %v1342, %v1332
        %v1344 = vadd.s32 %v1343, %v1334
        %v1345 = vand.u32 %v1322, 65535
        %v1346 = vshrl.u32 %v1322, 16
        %v1347 = vand.u32 %v1317, 65535
        %v1348 = vshrl.u32 %v1317, 16
        %v1349 = vmul.u32 %v1345, %v1347
        %v1350 = vmul.u32 %v1345, %v1348
        %v1351 = vmul.u32 %v1346, %v1347
        %v1352 = vmul.u32 %v1346, %v1348
        %v1353 = vshll.u32 %v1350, 16
        %v1354 = vshrl.u32 %v1350, 16
        %v1355 = vshll.u32 %v1351, 16
        %v1356 = vshrl.u32 %v1351, 16
        %vm1357 = vc.u32 %v1349, %v1353
        %v1358 = vsel %vm1357, 1, 0
        %v1359 = vadd.s32 %v1349, %v1353
        %v1360 = vadd.s32 %v1352, %v1358
        %vm1361 = vc.u32 %v1359, %v1355
        %v1362 = vsel %vm1361, 1, 0
        %v1363 = vadd.s32 %v1359, %v1355
        %v1364 = vadd.s32 %v1360, %v1362
        %v1365 = vadd.s32 %v1364, %v1354
        %v1366 = vadd.s32 %v1365, %v1356
        %v1367 = vmul.u32 %v1322, %v1313
        %v1368 = vadd.s32 %v1344, %v1363
        %vm1369 = vc.u32 %v1344, %v1363
        %v1370 = vadd.s32 %v1366, 1
        %v1371 = vsel %vm1369, %v1370, %v1366
        %v1372 = vadd.s32 %v1367, %v1371
        %v1373 = vadd.s32 %v1372, 536870912
        %v1374 = vshrl.u32 %v1373, 30
        %v1375 = vshll.u32 %v1374, 30
        %v1376 = vsub.s32 %v1372, %v1375
        %vm1377 = vcmp.lt.s32.totalorder %v1376, 0
        %v1378 = vsub.s32 0, %v1376
        %v1379 = vsel %vm1377, %v1378, %v1376
        %v1380 = vclz %v1379
        %v1381 = vsub.s32 %v1380, 2
        %vm1382 = vcmp.gt.s32.totalorder 0, %v1381
        %v1383 = vsel %vm1382, 0, %v1381
        %v1384 = vsub.s32 32, %v1383
        %v1385 = vshll.u32 %v1376, %v1383
        %v1386 = vshrl.u32 %v1368, %v1384
        %v1387 = vor.u32 %v1385, %v1386
        %v1388 = vsub.s32 4294967266, %v1383
        %v1389 = vadd.s32 %v1388, 127
        %v1390 = vshll.u32 %v1389, 23
        %v1391 = vor.u32 4788187, %v1390
        %v1392 = vand.u32 2147483647, %v1391
        %v1394 = vcvt.s32.f32 %v1387
        %v1395 = vmul.f32 %v1394, %v1392
        %v1396 = vxor.u32 %v1395, 2147483648
        %v1397 = vsel %vm1276, %v1396, %v1395
        %v1398 = vsub.s32 4, %v1374
        %v1399 = vsel %vm1276, %v1398, %v1374
        %v1400 = vsel %vm1275, %v622, %v1397
        %v1401 = vsel %vm1275, 0, %v1399
        %v1402 = vmul.f32 %v1400, %v1400
        %v1403 = vmul.f32 %v1402, -0.001358992
        %v1404 = vadd.f32 %v1403, 0.041655596
        %v1405 = vmul.f32 %v1402, %v1404
        %v1406 = vadd.f32 %v1405, -0.4999988
        %v1407 = vmul.f32 %v1402, %v1406
        %v1408 = vadd.f32 1.0, %v1407
        %v1409 = vmul.f32 %v1400, %v1400
        %v1410 = vmul.f32 %v1409, -0.00019511016
        %v1411 = vadd.f32 %v1410, 0.008332121
        %v1412 = vmul.f32 %v1409, %v1411
        %v1413 = vadd.f32 %v1412, -0.16666654
        %v1414 = vmul.f32 %v1409, %v1413
        %v1415 = vadd.f32 %v1414, 1.0
        %v1416 = vmul.f32 %v1415, %v1400
        %vm1417 = vweird.f32 %v622
        %v1418 = vand.u32 %v1401, 3
        %vm1419 = vcmp.lt.s32.totalorder %v1418, 2
        %vm1420 = vcmp.eq.s32.totalorder %v1418, 0
        %v1421 = vxor.u32 %v1416, 2147483648
        %v1422 = vsel %vm1420, %v1408, %v1421
        %vm1423 = vcmp.eq.s32.totalorder %v1418, 2
        %v1424 = vxor.u32 %v1408, 2147483648
        %v1425 = vsel %vm1423, %v1424, %v1416
        %v1426 = vsel %vm1419, %v1422, %v1425
        %v1427 = vsel %vm1417, nan, %v1426
        %v1428 = vand.u32 2147483647, %v618
        %vm1429 = vcmp.le.f32.partialorder %v1428, 0.7853982
        %vm1430 = vcmp.lt.s32.totalorder %v618, 0
        %v1431 = vand.u32 %v618, 2139095040
        %v1432 = vshrl.u32 %v1431, 23
        %v1433 = vsub.s32 %v1432, 127
        %v1434 = vand.u32 2147483647, %v618
        %v1435 = vand.u32 %v1434, 8388607
        %v1436 = vor.u32 %v1435, 8388608
        %v1437 = vsub.s32 0, %v1436
        %v1438 = vadd.s32 %v1433, 1
        %vm1439 = vcmp.gt.s32.totalorder %v1438, 0
        %v1440 = vsel %vm1439, %v1438, 0
        %v1441 = vshrl.u32 %v1440, 5
        %v1442 = vand.u32 %v1440, 31
        %v1443 = vsub.s32 32, %v1442
        %v1444 = vshrl.u32 683565275, %v1443
        %v1445 = vshll.u32 683565275, %v1442
        %v1446 = vshrl.u32 2475754826, %v1443
        %v1447 = vor.u32 %v1445, %v1446
        %v1448 = vshll.u32 2475754826, %v1442
        %v1449 = vshrl.u32 2131351028, %v1443
        %v1450 = vor.u32 %v1448, %v1449
        %v1451 = vshll.u32 2131351028, %v1442
        %v1452 = vshrl.u32 2102212464, %v1443
        %v1453 = vor.u32 %v1451, %v1452
        %v1454 = vshll.u32 2102212464, %v1442
        %v1455 = vshrl.u32 920167782, %v1443
        %v1456 = vor.u32 %v1454, %v1455
        %v1457 = vshll.u32 920167782, %v1442
        %v1458 = vshrl.u32 1326507024, %v1443
        %v1459 = vor.u32 %v1457, %v1458
        %vm1460 = vcmp.lt.s32.totalorder %v1441, 1
        %vm1461 = vcmp.lt.s32.totalorder %v1441, 2
        %vm1462 = vcmp.lt.s32.totalorder %v1441, 3
        %vm1463 = vcmp.lt.s32.totalorder %v1441, 4
        %v1464 = vsel %vm1460, %v1444, %v1447
        %v1465 = vsel %vm1463, %v1453, 2102212464
        %v1466 = vsel %vm1462, %v1450, %v1465
        %v1467 = vsel %vm1461, %v1464, %v1466
        %v1468 = vsel %vm1460, %v1447, %v1450
        %v1469 = vsel %vm1463, %v1456, 920167782
        %v1470 = vsel %vm1462, %v1453, %v1469
        %v1471 = vsel %vm1461, %v1468, %v1470
        %v1472 = vsel %vm1460, %v1450, %v1453
        %v1473 = vsel %vm1463, %v1459, 1326507024
        %v1474 = vsel %vm1462, %v1456, %v1473
        %v1475 = vsel %vm1461, %v1472, %v1474
        %v1476 = vshll.u32 %v1436, 8
        %v1477 = vand.u32 %v1476, 65535
        %v1478 = vshrl.u32 %v1476, 16
        %v1479 = vand.u32 %v1475, 65535
        %v1480 = vshrl.u32 %v1475, 16
        %v1481 = vmul.u32 %v1477, %v1479
        %v1482 = vmul.u32 %v1477, %v1480
        %v1483 = vmul.u32 %v1478, %v1479
        %v1484 = vmul.u32 %v1478, %v1480
        %v1485 = vshll.u32 %v1482, 16
        %v1486 = vshrl.u32 %v1482, 16
        %v1487 = vshll.u32 %v1483, 16
        %v1488 = vshrl.u32 %v1483, 16
        %vm1489 = vc.u32 %v1481, %v1485
        %v1490 = vsel %vm1489, 1, 0
        %v1491 = vadd.s32 %v1481, %v1485
        %v1492 = vadd.s32 %v1484, %v1490
        %vm1493 = vc.u32 %v1491, %v1487
        %v1494 = vsel %vm1493, 1, 0
        %v1495 = vadd.s32 %v1491, %v1487
        %v1496 = vadd.s32 %v1492, %v1494
        %v1497 = vadd.s32 %v1496, %v1486
        %v1498 = vadd.s32 %v1497, %v1488
        %v1499 = vand.u32 %v1476, 65535
        %v1500 = vshrl.u32 %v1476, 16
        %v1501 = vand.u32 %v1471, 65535
        %v1502 = vshrl.u32 %v1471, 16
        %v1503 = vmul.u32 %v1499, %v1501
        %v1504 = vmul.u32 %v1499, %v1502
        %v1505 = vmul.u32 %v1500, %v1501
        %v1506 = vmul.u32 %v1500, %v1502
        %v1507 = vshll.u32 %v1504, 16
        %v1508 = vshrl.u32 %v1504, 16
        %v1509 = vshll.u32 %v1505, 16
        %v1510 = vshrl.u32 %v1505, 16
        %vm1511 = vc.u32 %v1503, %v1507
        %v1512 = vsel %vm1511, 1, 0
        %v1513 = vadd.s32 %v1503, %v1507
        %v1514 = vadd.s32 %v1506, %v1512
        %vm1515 = vc.u32 %v1513, %v1509
        %v1516 = vsel %vm1515, 1, 0
        %v1517 = vadd.s32 %v1513, %v1509
        %v1518 = vadd.s32 %v1514, %v1516
        %v1519 = vadd.s32 %v1518, %v1508
        %v1520 = vadd.s32 %v1519, %v1510
        %v1521 = vmul.u32 %v1476, %v1467
        %v1522 = vadd.s32 %v1498, %v1517
        %vm1523 = vc.u32 %v1498, %v1517
        %v1524 = vadd.s32 %v1520, 1
        %v1525 = vsel %vm1523, %v1524, %v1520
        %v1526 = vadd.s32 %v1521, %v1525
        %v1527 = vadd.s32 %v1526, 536870912
        %v1528 = vshrl.u32 %v1527, 30
        %v1529 = vshll.u32 %v1528, 30
        %v1530 = vsub.s32 %v1526, %v1529
        %vm1531 = vcmp.lt.s32.totalorder %v1530, 0
        %v1532 = vsub.s32 0, %v1530
        %v1533 = vsel %vm1531, %v1532, %v1530
        %v1534 = vclz %v1533
        %v1535 = vsub.s32 %v1534, 2
        %vm1536 = vcmp.gt.s32.totalorder 0, %v1535
        %v1537 = vsel %vm1536, 0, %v1535
        %v1538 = vsub.s32 32, %v1537
        %v1539 = vshll.u32 %v1530, %v1537
        %v1540 = vshrl.u32 %v1522, %v1538
        %v1541 = vor.u32 %v1539, %v1540
        %v1542 = vsub.s32 4294967266, %v1537
        %v1543 = vadd.s32 %v1542, 127
        %v1544 = vshll.u32 %v1543, 23
        %v1545 = vor.u32 4788187, %v1544
        %v1546 = vand.u32 2147483647, %v1545
        %v1548 = vcvt.s32.f32 %v1541
        %v1549 = vmul.f32 %v1548, %v1546
        %v1550 = vxor.u32 %v1549, 2147483648
        %v1551 = vsel %vm1430, %v1550, %v1549
        %v1552 = vsub.s32 4, %v1528
        %v1553 = vsel %vm1430, %v1552, %v1528
        %v1554 = vsel %vm1429, %v618, %v1551
        %v1555 = vsel %vm1429, 0, %v1553
        %v1556 = vmul.f32 %v1554, %v1554
        %v1557 = vmul.f32 %v1556, -0.001358992
        %v1558 = vadd.f32 %v1557, 0.041655596
        %v1559 = vmul.f32 %v1556, %v1558
        %v1560 = vadd.f32 %v1559, -0.4999988
        %v1561 = vmul.f32 %v1556, %v1560
        %v1562 = vadd.f32 1.0, %v1561
        %v1563 = vmul.f32 %v1554, %v1554
        %v1564 = vmul.f32 %v1563, -0.00019511016
        %v1565 = vadd.f32 %v1564, 0.008332121
        %v1566 = vmul.f32 %v1563, %v1565
        %v1567 = vadd.f32 %v1566, -0.16666654
        %v1568 = vmul.f32 %v1563, %v1567
        %v1569 = vadd.f32 %v1568, 1.0
        %v1570 = vmul.f32 %v1569, %v1554
        %vm1571 = vweird.f32 %v618
        %v1572 = vadd.s32 %v1555, 3
        %v1573 = vand.u32 %v1572, 3
        %vm1574 = vcmp.lt.s32.totalorder %v1573, 2
        %vm1575 = vcmp.eq.s32.totalorder %v1573, 0
        %v1576 = vxor.u32 %v1570, 2147483648
        %v1577 = vsel %vm1575, %v1562, %v1576
        %vm1578 = vcmp.eq.s32.totalorder %v1573, 2
        %v1579 = vxor.u32 %v1562, 2147483648
        %v1580 = vsel %vm1578, %v1579, %v1570
        %v1581 = vsel %vm1574, %v1577, %v1580
        %v1582 = vsel %vm1571, nan, %v1581
        %v1583 = vand.u32 2147483647, %v619
        %vm1584 = vcmp.le.f32.partialorder %v1583, 0.7853982
        %vm1585 = vcmp.lt.s32.totalorder %v619, 0
        %v1586 = vand.u32 %v619, 2139095040
        %v1587 = vshrl.u32 %v1586, 23
        %v1588 = vsub.s32 %v1587, 127
        %v1589 = vand.u32 2147483647, %v619
        %v1590 = vand.u32 %v1589, 8388607
        %v1591 = vor.u32 %v1590, 8388608
        %v1592 = vsub.s32 0, %v1591
        %v1593 = vadd.s32 %v1588, 1
        %vm1594 = vcmp.gt.s32.totalorder %v1593, 0
        %v1595 = vsel %vm1594, %v1593, 0
        %v1596 = vshrl.u32 %v1595, 5
        %v1597 = vand.u32 %v1595, 31
        %v1598 = vsub.s32 32, %v1597
        %v1599 = vshrl.u32 683565275, %v1598
        %v1600 = vshll.u32 683565275, %v1597
        %v1601 = vshrl.u32 2475754826, %v1598
        %v1602 = vor.u32 %v1600, %v1601
        %v1603 = vshll.u32 2475754826, %v1597
        %v1604 = vshrl.u32 2131351028, %v1598
        %v1605 = vor.u32 %v1603, %v1604
        %v1606 = vshll.u32 2131351028, %v1597
        %v1607 = vshrl.u32 2102212464, %v1598
        %v1608 = vor.u32 %v1606, %v1607
        %v1609 = vshll.u32 2102212464, %v1597
        %v1610 = vshrl.u32 920167782, %v1598
        %v1611 = vor.u32 %v1609, %v1610
        %v1612 = vshll.u32 920167782, %v1597
        %v1613 = vshrl.u32 1326507024, %v1598
        %v1614 = vor.u32 %v1612, %v1613
        %vm1615 = vcmp.lt.s32.totalorder %v1596, 1
        %vm1616 = vcmp.lt.s32.totalorder %v1596, 2
        %vm1617 = vcmp.lt.s32.totalorder %v1596, 3
        %vm1618 = vcmp.lt.s32.totalorder %v1596, 4
        %v1619 = vsel %vm1615, %v1599, %v1602
        %v1620 = vsel %vm1618, %v1608, 2102212464
        %v1621 = vsel %vm1617, %v1605, %v1620
        %v1622 = vsel %vm1616, %v1619, %v1621
        %v1623 = vsel %vm1615, %v1602, %v1605
        %v1624 = vsel %vm1618, %v1611, 920167782
        %v1625 = vsel %vm1617, %v1608, %v1624
        %v1626 = vsel %vm1616, %v1623, %v1625
        %v1627 = vsel %vm1615, %v1605, %v1608
        %v1628 = vsel %vm1618, %v1614, 1326507024
        %v1629 = vsel %vm1617, %v1611, %v1628
        %v1630 = vsel %vm1616, %v1627, %v1629
        %v1631 = vshll.u32 %v1591, 8
        %v1632 = vand.u32 %v1631, 65535
        %v1633 = vshrl.u32 %v1631, 16
        %v1634 = vand.u32 %v1630, 65535
        %v1635 = vshrl.u32 %v1630, 16
        %v1636 = vmul.u32 %v1632, %v1634
        %v1637 = vmul.u32 %v1632, %v1635
        %v1638 = vmul.u32 %v1633, %v1634
        %v1639 = vmul.u32 %v1633, %v1635
        %v1640 = vshll.u32 %v1637, 16
        %v1641 = vshrl.u32 %v1637, 16
        %v1642 = vshll.u32 %v1638, 16
        %v1643 = vshrl.u32 %v1638, 16
        %vm1644 = vc.u32 %v1636, %v1640
        %v1645 = vsel %vm1644, 1, 0
        %v1646 = vadd.s32 %v1636, %v1640
        %v1647 = vadd.s32 %v1639, %v1645
        %vm1648 = vc.u32 %v1646, %v1642
        %v1649 = vsel %vm1648, 1, 0
        %v1650 = vadd.s32 %v1646, %v1642
        %v1651 = vadd.s32 %v1647, %v1649
        %v1652 = vadd.s32 %v1651, %v1641
        %v1653 = vadd.s32 %v1652, %v1643
        %v1654 = vand.u32 %v1631, 65535
        %v1655 = vshrl.u32 %v1631, 16
        %v1656 = vand.u32 %v1626, 65535
        %v1657 = vshrl.u32 %v1626, 16
        %v1658 = vmul.u32 %v1654, %v1656
        %v1659 = vmul.u32 %v1654, %v1657
        %v1660 = vmul.u32 %v1655, %v1656
        %v1661 = vmul.u32 %v1655, %v1657
        %v1662 = vshll.u32 %v1659, 16
        %v1663 = vshrl.u32 %v1659, 16
        %v1664 = vshll.u32 %v1660, 16
        %v1665 = vshrl.u32 %v1660, 16
        %vm1666 = vc.u32 %v1658, %v1662
        %v1667 = vsel %vm1666, 1, 0
        %v1668 = vadd.s32 %v1658, %v1662
        %v1669 = vadd.s32 %v1661, %v1667
        %vm1670 = vc.u32 %v1668, %v1664
        %v1671 = vsel %vm1670, 1, 0
        %v1672 = vadd.s32 %v1668, %v1664
        %v1673 = vadd.s32 %v1669, %v1671
        %v1674 = vadd.s32 %v1673, %v1663
        %v1675 = vadd.s32 %v1674, %v1665
        %v1676 = vmul.u32 %v1631, %v1622
        %v1677 = vadd.s32 %v1653, %v1672
        %vm1678 = vc.u32 %v1653, %v1672
        %v1679 = vadd.s32 %v1675, 1
        %v1680 = vsel %vm1678, %v1679, %v1675
        %v1681 = vadd.s32 %v1676, %v1680
        %v1682 = vadd.s32 %v1681, 536870912
        %v1683 = vshrl.u32 %v1682, 30
        %v1684 = vshll.u32 %v1683, 30
        %v1685 = vsub.s32 %v1681, %v1684
        %vm1686 = vcmp.lt.s32.totalorder %v1685, 0
        %v1687 = vsub.s32 0, %v1685
        %v1688 = vsel %vm1686, %v1687, %v1685
        %v1689 = vclz %v1688
        %v1690 = vsub.s32 %v1689, 2
        %vm1691 = vcmp.gt.s32.totalorder 0, %v1690
        %v1692 = vsel %vm1691, 0, %v1690
        %v1693 = vsub.s32 32, %v1692
        %v1694 = vshll.u32 %v1685, %v1692
        %v1695 = vshrl.u32 %v1677, %v1693
        %v1696 = vor.u32 %v1694, %v1695
        %v1697 = vsub.s32 4294967266, %v1692
        %v1698 = vadd.s32 %v1697, 127
        %v1699 = vshll.u32 %v1698, 23
        %v1700 = vor.u32 4788187, %v1699
        %v1701 = vand.u32 2147483647, %v1700
        %v1703 = vcvt.s32.f32 %v1696
        %v1704 = vmul.f32 %v1703, %v1701
        %v1705 = vxor.u32 %v1704, 2147483648
        %v1706 = vsel %vm1585, %v1705, %v1704
        %v1707 = vsub.s32 4, %v1683
        %v1708 = vsel %vm1585, %v1707, %v1683
        %v1709 = vsel %vm1584, %v619, %v1706
        %v1710 = vsel %vm1584, 0, %v1708
        %v1711 = vmul.f32 %v1709, %v1709
        %v1712 = vmul.f32 %v1711, -0.001358992
        %v1713 = vadd.f32 %v1712, 0.041655596
        %v1714 = vmul.f32 %v1711, %v1713
        %v1715 = vadd.f32 %v1714, -0.4999988
        %v1716 = vmul.f32 %v1711, %v1715
        %v1717 = vadd.f32 1.0, %v1716
        %v1718 = vmul.f32 %v1709, %v1709
        %v1719 = vmul.f32 %v1718, -0.00019511016
        %v1720 = vadd.f32 %v1719, 0.008332121
        %v1721 = vmul.f32 %v1718, %v1720
        %v1722 = vadd.f32 %v1721, -0.16666654
        %v1723 = vmul.f32 %v1718, %v1722
        %v1724 = vadd.f32 %v1723, 1.0
        %v1725 = vmul.f32 %v1724, %v1709
        %vm1726 = vweird.f32 %v619
        %v1727 = vadd.s32 %v1710, 3
        %v1728 = vand.u32 %v1727, 3
        %vm1729 = vcmp.lt.s32.totalorder %v1728, 2
        %vm1730 = vcmp.eq.s32.totalorder %v1728, 0
        %v1731 = vxor.u32 %v1725, 2147483648
        %v1732 = vsel %vm1730, %v1717, %v1731
        %vm1733 = vcmp.eq.s32.totalorder %v1728, 2
        %v1734 = vxor.u32 %v1717, 2147483648
        %v1735 = vsel %vm1733, %v1734, %v1725
        %v1736 = vsel %vm1729, %v1732, %v1735
        %v1737 = vsel %vm1726, nan, %v1736
        %v1738 = vand.u32 2147483647, %v620
        %vm1739 = vcmp.le.f32.partialorder %v1738, 0.7853982
        %vm1740 = vcmp.lt.s32.totalorder %v620, 0
        %v1741 = vand.u32 %v620, 2139095040
        %v1742 = vshrl.u32 %v1741, 23
        %v1743 = vsub.s32 %v1742, 127
        %v1744 = vand.u32 2147483647, %v620
        %v1745 = vand.u32 %v1744, 8388607
        %v1746 = vor.u32 %v1745, 8388608
        %v1747 = vsub.s32 0, %v1746
        %v1748 = vadd.s32 %v1743, 1
        %vm1749 = vcmp.gt.s32.totalorder %v1748, 0
        %v1750 = vsel %vm1749, %v1748, 0
        %v1751 = vshrl.u32 %v1750, 5
        %v1752 = vand.u32 %v1750, 31
        %v1753 = vsub.s32 32, %v1752
        %v1754 = vshrl.u32 683565275, %v1753
        %v1755 = vshll.u32 683565275, %v1752
        %v1756 = vshrl.u32 2475754826, %v1753
        %v1757 = vor.u32 %v1755, %v1756
        %v1758 = vshll.u32 2475754826, %v1752
        %v1759 = vshrl.u32 2131351028, %v1753
        %v1760 = vor.u32 %v1758, %v1759
        %v1761 = vshll.u32 2131351028, %v1752
        %v1762 = vshrl.u32 2102212464, %v1753
        %v1763 = vor.u32 %v1761, %v1762
        %v1764 = vshll.u32 2102212464, %v1752
        %v1765 = vshrl.u32 920167782, %v1753
        %v1766 = vor.u32 %v1764, %v1765
        %v1767 = vshll.u32 920167782, %v1752
        %v1768 = vshrl.u32 1326507024, %v1753
        %v1769 = vor.u32 %v1767, %v1768
        %vm1770 = vcmp.lt.s32.totalorder %v1751, 1
        %vm1771 = vcmp.lt.s32.totalorder %v1751, 2
        %vm1772 = vcmp.lt.s32.totalorder %v1751, 3
        %vm1773 = vcmp.lt.s32.totalorder %v1751, 4
        %v1774 = vsel %vm1770, %v1754, %v1757
        %v1775 = vsel %vm1773, %v1763, 2102212464
        %v1776 = vsel %vm1772, %v1760, %v1775
        %v1777 = vsel %vm1771, %v1774, %v1776
        %v1778 = vsel %vm1770, %v1757, %v1760
        %v1779 = vsel %vm1773, %v1766, 920167782
        %v1780 = vsel %vm1772, %v1763, %v1779
        %v1781 = vsel %vm1771, %v1778, %v1780
        %v1782 = vsel %vm1770, %v1760, %v1763
        %v1783 = vsel %vm1773, %v1769, 1326507024
        %v1784 = vsel %vm1772, %v1766, %v1783
        %v1785 = vsel %vm1771, %v1782, %v1784
        %v1786 = vshll.u32 %v1746, 8
        %v1787 = vand.u32 %v1786, 65535
        %v1788 = vshrl.u32 %v1786, 16
        %v1789 = vand.u32 %v1785, 65535
        %v1790 = vshrl.u32 %v1785, 16
        %v1791 = vmul.u32 %v1787, %v1789
        %v1792 = vmul.u32 %v1787, %v1790
        %v1793 = vmul.u32 %v1788, %v1789
        %v1794 = vmul.u32 %v1788, %v1790
        %v1795 = vshll.u32 %v1792, 16
        %v1796 = vshrl.u32 %v1792, 16
        %v1797 = vshll.u32 %v1793, 16
        %v1798 = vshrl.u32 %v1793, 16
        %vm1799 = vc.u32 %v1791, %v1795
        %v1800 = vsel %vm1799, 1, 0
        %v1801 = vadd.s32 %v1791, %v1795
        %v1802 = vadd.s32 %v1794, %v1800
        %vm1803 = vc.u32 %v1801, %v1797
        %v1804 = vsel %vm1803, 1, 0
        %v1805 = vadd.s32 %v1801, %v1797
        %v1806 = vadd.s32 %v1802, %v1804
        %v1807 = vadd.s32 %v1806, %v1796
        %v1808 = vadd.s32 %v1807, %v1798
        %v1809 = vand.u32 %v1786, 65535
        %v1810 = vshrl.u32 %v1786, 16
        %v1811 = vand.u32 %v1781, 65535
        %v1812 = vshrl.u32 %v1781, 16
        %v1813 = vmul.u32 %v1809, %v1811
        %v1814 = vmul.u32 %v1809, %v1812
        %v1815 = vmul.u32 %v1810, %v1811
        %v1816 = vmul.u32 %v1810, %v1812
        %v1817 = vshll.u32 %v1814, 16
        %v1818 = vshrl.u32 %v1814, 16
        %v1819 = vshll.u32 %v1815, 16
        %v1820 = vshrl.u32 %v1815, 16
        %vm1821 = vc.u32 %v1813, %v1817
        %v1822 = vsel %vm1821, 1, 0
        %v1823 = vadd.s32 %v1813, %v1817
        %v1824 = vadd.s32 %v1816, %v1822
        %vm1825 = vc.u32 %v1823, %v1819
        %v1826 = vsel %vm1825, 1, 0
        %v1827 = vadd.s32 %v1823, %v1819
        %v1828 = vadd.s32 %v1824, %v1826
        %v1829 = vadd.s32 %v1828, %v1818
        %v1830 = vadd.s32 %v1829, %v1820
        %v1831 = vmul.u32 %v1786, %v1777
        %v1832 = vadd.s32 %v1808, %v1827
        %vm1833 = vc.u32 %v1808, %v1827
        %v1834 = vadd.s32 %v1830, 1
        %v1835 = vsel %vm1833, %v1834, %v1830
        %v1836 = vadd.s32 %v1831, %v1835
        %v1837 = vadd.s32 %v1836, 536870912
        %v1838 = vshrl.u32 %v1837, 30
        %v1839 = vshll.u32 %v1838, 30
        %v1840 = vsub.s32 %v1836, %v1839
        %vm1841 = vcmp.lt.s32.totalorder %v1840, 0
        %v1842 = vsub.s32 0, %v1840
        %v1843 = vsel %vm1841, %v1842, %v1840
        %v1844 = vclz %v1843
        %v1845 = vsub.s32 %v1844, 2
        %vm1846 = vcmp.gt.s32.totalorder 0, %v1845
        %v1847 = vsel %vm1846, 0, %v1845
        %v1848 = vsub.s32 32, %v1847
        %v1849 = vshll.u32 %v1840, %v1847
        %v1850 = vshrl.u32 %v1832, %v1848
        %v1851 = vor.u32 %v1849, %v1850
        %v1852 = vsub.s32 4294967266, %v1847
        %v1853 = vadd.s32 %v1852, 127
        %v1854 = vshll.u32 %v1853, 23
        %v1855 = vor.u32 4788187, %v1854
        %v1856 = vand.u32 2147483647, %v1855
        %v1858 = vcvt.s32.f32 %v1851
        %v1859 = vmul.f32 %v1858, %v1856
        %v1860 = vxor.u32 %v1859, 2147483648
        %v1861 = vsel %vm1740, %v1860, %v1859
        %v1862 = vsub.s32 4, %v1838
        %v1863 = vsel %vm1740, %v1862, %v1838
        %v1864 = vsel %vm1739, %v620, %v1861
        %v1865 = vsel %vm1739, 0, %v1863
        %v1866 = vmul.f32 %v1864, %v1864
        %v1867 = vmul.f32 %v1866, -0.001358992
        %v1868 = vadd.f32 %v1867, 0.041655596
        %v1869 = vmul.f32 %v1866, %v1868
        %v1870 = vadd.f32 %v1869, -0.4999988
        %v1871 = vmul.f32 %v1866, %v1870
        %v1872 = vadd.f32 1.0, %v1871
        %v1873 = vmul.f32 %v1864, %v1864
        %v1874 = vmul.f32 %v1873, -0.00019511016
        %v1875 = vadd.f32 %v1874, 0.008332121
        %v1876 = vmul.f32 %v1873, %v1875
        %v1877 = vadd.f32 %v1876, -0.16666654
        %v1878 = vmul.f32 %v1873, %v1877
        %v1879 = vadd.f32 %v1878, 1.0
        %v1880 = vmul.f32 %v1879, %v1864
        %vm1881 = vweird.f32 %v620
        %v1882 = vadd.s32 %v1865, 3
        %v1883 = vand.u32 %v1882, 3
        %vm1884 = vcmp.lt.s32.totalorder %v1883, 2
        %vm1885 = vcmp.eq.s32.totalorder %v1883, 0
        %v1886 = vxor.u32 %v1880, 2147483648
        %v1887 = vsel %vm1885, %v1872, %v1886
        %vm1888 = vcmp.eq.s32.totalorder %v1883, 2
        %v1889 = vxor.u32 %v1872, 2147483648
        %v1890 = vsel %vm1888, %v1889, %v1880
        %v1891 = vsel %vm1884, %v1887, %v1890
        %v1892 = vsel %vm1881, nan, %v1891
        %v1893 = vand.u32 2147483647, %v621
        %vm1894 = vcmp.le.f32.partialorder %v1893, 0.7853982
        %vm1895 = vcmp.lt.s32.totalorder %v621, 0
        %v1896 = vand.u32 %v621, 2139095040
        %v1897 = vshrl.u32 %v1896, 23
        %v1898 = vsub.s32 %v1897, 127
        %v1899 = vand.u32 2147483647, %v621
        %v1900 = vand.u32 %v1899, 8388607
        %v1901 = vor.u32 %v1900, 8388608
        %v1902 = vsub.s32 0, %v1901
        %v1903 = vadd.s32 %v1898, 1
        %vm1904 = vcmp.gt.s32.totalorder %v1903, 0
        %v1905 = vsel %vm1904, %v1903, 0
        %v1906 = vshrl.u32 %v1905, 5
        %v1907 = vand.u32 %v1905, 31
        %v1908 = vsub.s32 32, %v1907
        %v1909 = vshrl.u32 683565275, %v1908
        %v1910 = vshll.u32 683565275, %v1907
        %v1911 = vshrl.u32 2475754826, %v1908
        %v1912 = vor.u32 %v1910, %v1911
        %v1913 = vshll.u32 2475754826, %v1907
        %v1914 = vshrl.u32 2131351028, %v1908
        %v1915 = vor.u32 %v1913, %v1914
        %v1916 = vshll.u32 2131351028, %v1907
        %v1917 = vshrl.u32 2102212464, %v1908
        %v1918 = vor.u32 %v1916, %v1917
        %v1919 = vshll.u32 2102212464, %v1907
        %v1920 = vshrl.u32 920167782, %v1908
        %v1921 = vor.u32 %v1919, %v1920
        %v1922 = vshll.u32 920167782, %v1907
        %v1923 = vshrl.u32 1326507024, %v1908
        %v1924 = vor.u32 %v1922, %v1923
        %vm1925 = vcmp.lt.s32.totalorder %v1906, 1
        %vm1926 = vcmp.lt.s32.totalorder %v1906, 2
        %vm1927 = vcmp.lt.s32.totalorder %v1906, 3
        %vm1928 = vcmp.lt.s32.totalorder %v1906, 4
        %v1929 = vsel %vm1925, %v1909, %v1912
        %v1930 = vsel %vm1928, %v1918, 2102212464
        %v1931 = vsel %vm1927, %v1915, %v1930
        %v1932 = vsel %vm1926, %v1929, %v1931
        %v1933 = vsel %vm1925, %v1912, %v1915
        %v1934 = vsel %vm1928, %v1921, 920167782
        %v1935 = vsel %vm1927, %v1918, %v1934
        %v1936 = vsel %vm1926, %v1933, %v1935
        %v1937 = vsel %vm1925, %v1915, %v1918
        %v1938 = vsel %vm1928, %v1924, 1326507024
        %v1939 = vsel %vm1927, %v1921, %v1938
        %v1940 = vsel %vm1926, %v1937, %v1939
        %v1941 = vshll.u32 %v1901, 8
        %v1942 = vand.u32 %v1941, 65535
        %v1943 = vshrl.u32 %v1941, 16
        %v1944 = vand.u32 %v1940, 65535
        %v1945 = vshrl.u32 %v1940, 16
        %v1946 = vmul.u32 %v1942, %v1944
        %v1947 = vmul.u32 %v1942, %v1945
        %v1948 = vmul.u32 %v1943, %v1944
        %v1949 = vmul.u32 %v1943, %v1945
        %v1950 = vshll.u32 %v1947, 16
        %v1951 = vshrl.u32 %v1947, 16
        %v1952 = vshll.u32 %v1948, 16
        %v1953 = vshrl.u32 %v1948, 16
        %vm1954 = vc.u32 %v1946, %v1950
        %v1955 = vsel %vm1954, 1, 0
        %v1956 = vadd.s32 %v1946, %v1950
        %v1957 = vadd.s32 %v1949, %v1955
        %vm1958 = vc.u32 %v1956, %v1952
        %v1959 = vsel %vm1958, 1, 0
        %v1960 = vadd.s32 %v1956, %v1952
        %v1961 = vadd.s32 %v1957, %v1959
        %v1962 = vadd.s32 %v1961, %v1951
        %v1963 = vadd.s32 %v1962, %v1953
        %v1964 = vand.u32 %v1941, 65535
        %v1965 = vshrl.u32 %v1941, 16
        %v1966 = vand.u32 %v1936, 65535
        %v1967 = vshrl.u32 %v1936, 16
        %v1968 = vmul.u32 %v1964, %v1966
        %v1969 = vmul.u32 %v1964, %v1967
        %v1970 = vmul.u32 %v1965, %v1966
        %v1971 = vmul.u32 %v1965, %v1967
        %v1972 = vshll.u32 %v1969, 16
        %v1973 = vshrl.u32 %v1969, 16
        %v1974 = vshll.u32 %v1970, 16
        %v1975 = vshrl.u32 %v1970, 16
        %vm1976 = vc.u32 %v1968, %v1972
        %v1977 = vsel %vm1976, 1, 0
        %v1978 = vadd.s32 %v1968, %v1972
        %v1979 = vadd.s32 %v1971, %v1977
        %vm1980 = vc.u32 %v1978, %v1974
        %v1981 = vsel %vm1980, 1, 0
        %v1982 = vadd.s32 %v1978, %v1974
        %v1983 = vadd.s32 %v1979, %v1981
        %v1984 = vadd.s32 %v1983, %v1973
        %v1985 = vadd.s32 %v1984, %v1975
        %v1986 = vmul.u32 %v1941, %v1932
        %v1987 = vadd.s32 %v1963, %v1982
        %vm1988 = vc.u32 %v1963, %v1982
        %v1989 = vadd.s32 %v1985, 1
        %v1990 = vsel %vm1988, %v1989, %v1985
        %v1991 = vadd.s32 %v1986, %v1990
        %v1992 = vadd.s32 %v1991, 536870912
        %v1993 = vshrl.u32 %v1992, 30
        %v1994 = vshll.u32 %v1993, 30
        %v1995 = vsub.s32 %v1991, %v1994
        %vm1996 = vcmp.lt.s32.totalorder %v1995, 0
        %v1997 = vsub.s32 0, %v1995
        %v1998 = vsel %vm1996, %v1997, %v1995
        %v1999 = vclz %v1998
        %v2000 = vsub.s32 %v1999, 2
        %vm2001 = vcmp.gt.s32.totalorder 0, %v2000
        %v2002 = vsel %vm2001, 0, %v2000
        %v2003 = vsub.s32 32, %v2002
        %v2004 = vshll.u32 %v1995, %v2002
        %v2005 = vshrl.u32 %v1987, %v2003
        %v2006 = vor.u32 %v2004, %v2005
        %v2007 = vsub.s32 4294967266, %v2002
        %v2008 = vadd.s32 %v2007, 127
        %v2009 = vshll.u32 %v2008, 23
        %v2010 = vor.u32 4788187, %v2009
        %v2011 = vand.u32 2147483647, %v2010
        %v2013 = vcvt.s32.f32 %v2006
        %v2014 = vmul.f32 %v2013, %v2011
        %v2015 = vxor.u32 %v2014, 2147483648
        %v2016 = vsel %vm1895, %v2015, %v2014
        %v2017 = vsub.s32 4, %v1993
        %v2018 = vsel %vm1895, %v2017, %v1993
        %v2019 = vsel %vm1894, %v621, %v2016
        %v2020 = vsel %vm1894, 0, %v2018
        %v2021 = vmul.f32 %v2019, %v2019
        %v2022 = vmul.f32 %v2021, -0.001358992
        %v2023 = vadd.f32 %v2022, 0.041655596
        %v2024 = vmul.f32 %v2021, %v2023
        %v2025 = vadd.f32 %v2024, -0.4999988
        %v2026 = vmul.f32 %v2021, %v2025
        %v2027 = vadd.f32 1.0, %v2026
        %v2028 = vmul.f32 %v2019, %v2019
        %v2029 = vmul.f32 %v2028, -0.00019511016
        %v2030 = vadd.f32 %v2029, 0.008332121
        %v2031 = vmul.f32 %v2028, %v2030
        %v2032 = vadd.f32 %v2031, -0.16666654
        %v2033 = vmul.f32 %v2028, %v2032
        %v2034 = vadd.f32 %v2033, 1.0
        %v2035 = vmul.f32 %v2034, %v2019
        %vm2036 = vweird.f32 %v621
        %v2037 = vadd.s32 %v2020, 3
        %v2038 = vand.u32 %v2037, 3
        %vm2039 = vcmp.lt.s32.totalorder %v2038, 2
        %vm2040 = vcmp.eq.s32.totalorder %v2038, 0
        %v2041 = vxor.u32 %v2035, 2147483648
        %v2042 = vsel %vm2040, %v2027, %v2041
        %vm2043 = vcmp.eq.s32.totalorder %v2038, 2
        %v2044 = vxor.u32 %v2027, 2147483648
        %v2045 = vsel %vm2043, %v2044, %v2035
        %v2046 = vsel %vm2039, %v2042, %v2045
        %v2047 = vsel %vm2036, nan, %v2046
        %v2048 = vand.u32 2147483647, %v622
        %vm2049 = vcmp.le.f32.partialorder %v2048, 0.7853982
        %vm2050 = vcmp.lt.s32.totalorder %v622, 0
        %v2051 = vand.u32 %v622, 2139095040
        %v2052 = vshrl.u32 %v2051, 23
        %v2053 = vsub.s32 %v2052, 127
        %v2054 = vand.u32 2147483647, %v622
        %v2055 = vand.u32 %v2054, 8388607
        %v2056 = vor.u32 %v2055, 8388608
        %v2057 = vsub.s32 0, %v2056
        %v2058 = vadd.s32 %v2053, 1
        %vm2059 = vcmp.gt.s32.totalorder %v2058, 0
        %v2060 = vsel %vm2059, %v2058, 0
        %v2061 = vshrl.u32 %v2060, 5
        %v2062 = vand.u32 %v2060, 31
        %v2063 = vsub.s32 32, %v2062
        %v2064 = vshrl.u32 683565275, %v2063
        %v2065 = vshll.u32 683565275, %v2062
        %v2066 = vshrl.u32 2475754826, %v2063
        %v2067 = vor.u32 %v2065, %v2066
        %v2068 = vshll.u32 2475754826, %v2062
        %v2069 = vshrl.u32 2131351028, %v2063
        %v2070 = vor.u32 %v2068, %v2069
        %v2071 = vshll.u32 2131351028, %v2062
        %v2072 = vshrl.u32 2102212464, %v2063
        %v2073 = vor.u32 %v2071, %v2072
        %v2074 = vshll.u32 2102212464, %v2062
        %v2075 = vshrl.u32 920167782, %v2063
        %v2076 = vor.u32 %v2074, %v2075
        %v2077 = vshll.u32 920167782, %v2062
        %v2078 = vshrl.u32 1326507024, %v2063
        %v2079 = vor.u32 %v2077, %v2078
        %vm2080 = vcmp.lt.s32.totalorder %v2061, 1
        %vm2081 = vcmp.lt.s32.totalorder %v2061, 2
        %vm2082 = vcmp.lt.s32.totalorder %v2061, 3
        %vm2083 = vcmp.lt.s32.totalorder %v2061, 4
        %v2084 = vsel %vm2080, %v2064, %v2067
        %v2085 = vsel %vm2083, %v2073, 2102212464
        %v2086 = vsel %vm2082, %v2070, %v2085
        %v2087 = vsel %vm2081, %v2084, %v2086
        %v2088 = vsel %vm2080, %v2067, %v2070
        %v2089 = vsel %vm2083, %v2076, 920167782
        %v2090 = vsel %vm2082, %v2073, %v2089
        %v2091 = vsel %vm2081, %v2088, %v2090
        %v2092 = vsel %vm2080, %v2070, %v2073
        %v2093 = vsel %vm2083, %v2079, 1326507024
        %v2094 = vsel %vm2082, %v2076, %v2093
        %v2095 = vsel %vm2081, %v2092, %v2094
        %v2096 = vshll.u32 %v2056, 8
        %v2097 = vand.u32 %v2096, 65535
        %v2098 = vshrl.u32 %v2096, 16
        %v2099 = vand.u32 %v2095, 65535
        %v2100 = vshrl.u32 %v2095, 16
        %v2101 = vmul.u32 %v2097, %v2099
        %v2102 = vmul.u32 %v2097, %v2100
        %v2103 = vmul.u32 %v2098, %v2099
        %v2104 = vmul.u32 %v2098, %v2100
        %v2105 = vshll.u32 %v2102, 16
        %v2106 = vshrl.u32 %v2102, 16
        %v2107 = vshll.u32 %v2103, 16
        %v2108 = vshrl.u32 %v2103, 16
        %vm2109 = vc.u32 %v2101, %v2105
        %v2110 = vsel %vm2109, 1, 0
        %v2111 = vadd.s32 %v2101, %v2105
        %v2112 = vadd.s32 %v2104, %v2110
        %vm2113 = vc.u32 %v2111, %v2107
        %v2114 = vsel %vm2113, 1, 0
        %v2115 = vadd.s32 %v2111, %v2107
        %v2116 = vadd.s32 %v2112, %v2114
        %v2117 = vadd.s32 %v2116, %v2106
        %v2118 = vadd.s32 %v2117, %v2108
        %v2119 = vand.u32 %v2096, 65535
        %v2120 = vshrl.u32 %v2096, 16
        %v2121 = vand.u32 %v2091, 65535
        %v2122 = vshrl.u32 %v2091, 16
        %v2123 = vmul.u32 %v2119, %v2121
        %v2124 = vmul.u32 %v2119, %v2122
        %v2125 = vmul.u32 %v2120, %v2121
        %v2126 = vmul.u32 %v2120, %v2122
        %v2127 = vshll.u32 %v2124, 16
        %v2128 = vshrl.u32 %v2124, 16
        %v2129 = vshll.u32 %v2125, 16
        %v2130 = vshrl.u32 %v2125, 16
        %vm2131 = vc.u32 %v2123, %v2127
        %v2132 = vsel %vm2131, 1, 0
        %v2133 = vadd.s32 %v2123, %v2127
        %v2134 = vadd.s32 %v2126, %v2132
        %vm2135 = vc.u32 %v2133, %v2129
        %v2136 = vsel %vm2135, 1, 0
        %v2137 = vadd.s32 %v2133, %v2129
        %v2138 = vadd.s32 %v2134, %v2136
        %v2139 = vadd.s32 %v2138, %v2128
        %v2140 = vadd.s32 %v2139, %v2130
        %v2141 = vmul.u32 %v2096, %v2087
        %v2142 = vadd.s32 %v2118, %v2137
        %vm2143 = vc.u32 %v2118, %v2137
        %v2144 = vadd.s32 %v2140, 1
        %v2145 = vsel %vm2143, %v2144, %v2140
        %v2146 = vadd.s32 %v2141, %v2145
        %v2147 = vadd.s32 %v2146, 536870912
        %v2148 = vshrl.u32 %v2147, 30
        %v2149 = vshll.u32 %v2148, 30
        %v2150 = vsub.s32 %v2146, %v2149
        %vm2151 = vcmp.lt.s32.totalorder %v2150, 0
        %v2152 = vsub.s32 0, %v2150
        %v2153 = vsel %vm2151, %v2152, %v2150
        %v2154 = vclz %v2153
        %v2155 = vsub.s32 %v2154, 2
        %vm2156 = vcmp.gt.s32.totalorder 0, %v2155
        %v2157 = vsel %vm2156, 0, %v2155
        %v2158 = vsub.s32 32, %v2157
        %v2159 = vshll.u32 %v2150, %v2157
        %v2160 = vshrl.u32 %v2142, %v2158
        %v2161 = vor.u32 %v2159, %v2160
        %v2162 = vsub.s32 4294967266, %v2157
        %v2163 = vadd.s32 %v2162, 127
        %v2164 = vshll.u32 %v2163, 23
        %v2165 = vor.u32 4788187, %v2164
        %v2166 = vand.u32 2147483647, %v2165
        %v2168 = vcvt.s32.f32 %v2161
        %v2169 = vmul.f32 %v2168, %v2166
        %v2170 = vxor.u32 %v2169, 2147483648
        %v2171 = vsel %vm2050, %v2170, %v2169
        %v2172 = vsub.s32 4, %v2148
        %v2173 = vsel %vm2050, %v2172, %v2148
        %v2174 = vsel %vm2049, %v622, %v2171
        %v2175 = vsel %vm2049, 0, %v2173
        %v2176 = vmul.f32 %v2174, %v2174
        %v2177 = vmul.f32 %v2176, -0.001358992
        %v2178 = vadd.f32 %v2177, 0.041655596
        %v2179 = vmul.f32 %v2176, %v2178
        %v2180 = vadd.f32 %v2179, -0.4999988
        %v2181 = vmul.f32 %v2176, %v2180
        %v2182 = vadd.f32 1.0, %v2181
        %v2183 = vmul.f32 %v2174, %v2174
        %v2184 = vmul.f32 %v2183, -0.00019511016
        %v2185 = vadd.f32 %v2184, 0.008332121
        %v2186 = vmul.f32 %v2183, %v2185
        %v2187 = vadd.f32 %v2186, -0.16666654
        %v2188 = vmul.f32 %v2183, %v2187
        %v2189 = vadd.f32 %v2188, 1.0
        %v2190 = vmul.f32 %v2189, %v2174
        %vm2191 = vweird.f32 %v622
        %v2192 = vadd.s32 %v2175, 3
        %v2193 = vand.u32 %v2192, 3
        %vm2194 = vcmp.lt.s32.totalorder %v2193, 2
        %vm2195 = vcmp.eq.s32.totalorder %v2193, 0
        %v2196 = vxor.u32 %v2190, 2147483648
        %v2197 = vsel %vm2195, %v2182, %v2196
        %vm2198 = vcmp.eq.s32.totalorder %v2193, 2
        %v2199 = vxor.u32 %v2182, 2147483648
        %v2200 = vsel %vm2198, %v2199, %v2190
        %v2201 = vsel %vm2194, %v2197, %v2200
        %v2202 = vsel %vm2191, nan, %v2201
        %s2203 = sld [smem:[#allocation5 + %s19]]
        %s2204 = smul.u32 %s19, 3
        %s2205 = sadd.s32 %s2204, 2
        %s2206 = smul.u32 %s19, 18
        // While loop
        $region41: #{tpu_custom_call.1} parent=31 // loop_pre_header
          _
        $region42: #{tpu_custom_call.1} parent=31 // loop_header
          %s2208 = sphi 0, %s2210
          %p2209 = scmp.ge.s32.totalorder %s2208, %s2203
          %v2213 = vphi 1.0, %v2348
          %v2214 = vphi 1.0, %v2349
          %v2215 = vphi 1.0, %v2350
          %v2216 = vphi 1.0, %v2351
          %v2217 = vphi 1.0, %v2352
        $region43: #{tpu_custom_call.1} parent=31 // loop_header_branch
          %2212 = sbr.rel (%p2209) target = $region47
        $region44: #{tpu_custom_call.1} parent=31 // loop_body
          %s2218 = smul.u32 %s2208, 6
          %s2219 = sadd.s32 %s2206, %s2218
          %s2220 = sld [smem:[#allocation2 + %s2219]]
          %s2221 = sadd.s32 %s2219, 1
          %s2222 = sld [smem:[#allocation2 + %s2221]]
          %s2223 = sadd.s32 %s2219, 2
          %s2224 = sld [smem:[#allocation2 + %s2223]]
          %s2225 = sadd.s32 %s2219, 3
          %s2226 = sld [smem:[#allocation2 + %s2225]]
          %s2227 = sadd.s32 %s2219, 4
          %s2228 = sld [smem:[#allocation2 + %s2227]]
          %s2229 = sadd.s32 %s2219, 5
          %s2230 = sld [smem:[#allocation2 + %s2229]]
          %s2231 = sadd.s32 %s2205, %s2208
          %s2232 = sld [smem:[#allocation5 + %s2231]]
          %s2233 = smul.f32 %s2224, 0.5
          %s2234 = ssub.f32 %s2220, %s2233
          %s2235 = sadd.f32 %s2220, %s2233
          %s2236 = smul.f32 %s2226, 0.5
          %s2237 = ssub.f32 %s2222, %s2236
          %s2238 = sadd.f32 %s2222, %s2236
          %v2239 = vstv %s2235
          %v2240 = vmin.f32 %v633, %v2239
          %v2241 = vmin.f32 %v634, %v2239
          %v2242 = vmin.f32 %v635, %v2239
          %v2243 = vmin.f32 %v636, %v2239
          %v2244 = vmin.f32 %v637, %v2239
          %v2245 = vstv %s2234
          %v2246 = vmax.f32 %v628, %v2245
          %v2247 = vmax.f32 %v629, %v2245
          %v2248 = vmax.f32 %v630, %v2245
          %v2249 = vmax.f32 %v631, %v2245
          %v2250 = vmax.f32 %v632, %v2245
          %v2251 = vsub.f32 %v2240, %v2246
          %v2252 = vsub.f32 %v2241, %v2247
          %v2253 = vsub.f32 %v2242, %v2248
          %v2254 = vsub.f32 %v2243, %v2249
          %v2255 = vsub.f32 %v2244, %v2250
          %v2256 = vmax.f32 %v2251, 0.0
          %v2257 = vmax.f32 %v2252, 0.0
          %v2258 = vmax.f32 %v2253, 0.0
          %v2259 = vmax.f32 %v2254, 0.0
          %v2260 = vmax.f32 %v2255, 0.0
          %v2261 = vstv %s2238
          %v2262 = vmin.f32 %v648, %v2261
          %v2263 = vmin.f32 %v649, %v2261
          %v2264 = vmin.f32 %v650, %v2261
          %v2265 = vmin.f32 %v651, %v2261
          %v2266 = vmin.f32 %v652, %v2261
          %v2267 = vstv %s2237
          %v2268 = vmax.f32 %v643, %v2267
          %v2269 = vmax.f32 %v644, %v2267
          %v2270 = vmax.f32 %v645, %v2267
          %v2271 = vmax.f32 %v646, %v2267
          %v2272 = vmax.f32 %v647, %v2267
          %v2273 = vsub.f32 %v2262, %v2268
          %v2274 = vsub.f32 %v2263, %v2269
          %v2275 = vsub.f32 %v2264, %v2270
          %v2276 = vsub.f32 %v2265, %v2271
          %v2277 = vsub.f32 %v2266, %v2272
          %v2278 = vmax.f32 %v2273, 0.0
          %v2279 = vmax.f32 %v2274, 0.0
          %v2280 = vmax.f32 %v2275, 0.0
          %v2281 = vmax.f32 %v2276, 0.0
          %v2282 = vmax.f32 %v2277, 0.0
          %v2283 = vmul.f32 %v2256, %v2278
          %v2284 = vmul.f32 %v2257, %v2279
          %v2285 = vmul.f32 %v2258, %v2280
          %v2286 = vmul.f32 %v2259, %v2281
          %v2287 = vmul.f32 %v2260, %v2282
          %v2288 = vsub.f32 %v653, %v2283
          %v2289 = vsub.f32 %v654, %v2284
          %v2290 = vsub.f32 %v655, %v2285
          %v2291 = vsub.f32 %v656, %v2286
          %v2292 = vsub.f32 %v657, %v2287
          %s2293 = smul.f32 %s2224, %s2226
          %v2294 = vstv %s2293
          %v2295 = vadd.f32 %v2288, %v2294
          %v2296 = vadd.f32 %v2289, %v2294
          %v2297 = vadd.f32 %v2290, %v2294
          %v2298 = vadd.f32 %v2291, %v2294
          %v2299 = vadd.f32 %v2292, %v2294
          %v2300 = vstv %s2228
          %v2301 = vmul.f32 %v2300, %v811
          %v2302 = vmul.f32 %v2300, %v965
          %v2303 = vmul.f32 %v2300, %v1119
          %v2304 = vmul.f32 %v2300, %v1273
          %v2305 = vmul.f32 %v2300, %v1427
          %v2306 = vstv %s2230
          %v2307 = vmul.f32 %v2306, %v1582
          %v2308 = vmul.f32 %v2306, %v1737
          %v2309 = vmul.f32 %v2306, %v1892
          %v2310 = vmul.f32 %v2306, %v2047
          %v2311 = vmul.f32 %v2306, %v2202
          %v2312 = vadd.f32 %v2301, %v2307
          %v2313 = vadd.f32 %v2302, %v2308
          %v2314 = vadd.f32 %v2303, %v2309
          %v2315 = vadd.f32 %v2304, %v2310
          %v2316 = vadd.f32 %v2305, %v2311
          %v2317 = vand.u32 2147483647, %v2312
          %v2318 = vand.u32 2147483647, %v2313
          %v2319 = vand.u32 2147483647, %v2314
          %v2320 = vand.u32 2147483647, %v2315
          %v2321 = vand.u32 2147483647, %v2316
          %v2322 = vmul.f32 %v2283, %v2317
          %v2323 = vmul.f32 %v2284, %v2318
          %v2324 = vmul.f32 %v2285, %v2319
          %v2325 = vmul.f32 %v2286, %v2320
          %v2326 = vmul.f32 %v2287, %v2321
          %v2327 = vmul.f32 %v2295, 0.3
          %v2328 = vmul.f32 %v2296, 0.3
          %v2329 = vmul.f32 %v2297, 0.3
          %v2330 = vmul.f32 %v2298, 0.3
          %v2331 = vmul.f32 %v2299, 0.3
          %vm2332 = vcmp.gt.f32.partialorder %v2322, %v2327
          %vm2333 = vcmp.gt.f32.partialorder %v2323, %v2328
          %vm2334 = vcmp.gt.f32.partialorder %v2324, %v2329
          %vm2335 = vcmp.gt.f32.partialorder %v2325, %v2330
          %vm2336 = vcmp.gt.f32.partialorder %v2326, %v2331
          %v2337 = vstv %s2232
          %vm2338 = vcmp.eq.s32.totalorder %v209, %v2337
          %vm2339 = vcmp.eq.s32.totalorder %v210, %v2337
          %vm2340 = vcmp.eq.s32.totalorder %v211, %v2337
          %vm2341 = vcmp.eq.s32.totalorder %v212, %v2337
          %vm2342 = vcmp.eq.s32.totalorder %v213, %v2337
          %vm2343 = vmor %vm2332, %vm2338
          %vm2344 = vmor %vm2333, %vm2339
          %vm2345 = vmor %vm2334, %vm2340
          %vm2346 = vmor %vm2335, %vm2341
          %vm2347 = vmor %vm2336, %vm2342
          %v2348 = vsel %vm2343, 0.0, %v2213
          %v2349 = vsel %vm2344, 0.0, %v2214
          %v2350 = vsel %vm2345, 0.0, %v2215
          %v2351 = vsel %vm2346, 0.0, %v2216
          %v2352 = vsel %vm2347, 0.0, %v2217
        $region45: #{tpu_custom_call.1} parent=31 // loop_footer
          %s2210 = sadd.s32 %s2208, 1
        $region46: #{tpu_custom_call.1} parent=31 // loop_footer_branch
          %2207 = sbr.rel target = $region42
        $region47: #{tpu_custom_call.1} parent=31 // loop_exit
          _
        %s2353 = scalar_lea.vmem %s195, 200
        %v2354 = vld [vmem:[%s2353] sm:$0xff]
        %v2355 = vld [vmem:[%s2353 + $0x8] sm:$0xff]
        %v2356 = vld [vmem:[%s2353 + $0x10] sm:$0xff]
        %v2357 = vld [vmem:[%s2353 + $0x18] sm:$0xff]
        %v2358 = vld [vmem:[%s2353 + $0x20] sm:$0xf]
        %v2359 = vxor.u32 %v2354, 2147483648
        %v2360 = vxor.u32 %v2355, 2147483648
        %v2361 = vxor.u32 %v2356, 2147483648
        %v2362 = vxor.u32 %v2357, 2147483648
        %v2363 = vxor.u32 %v2358, 2147483648
        %v2364 = vmul.f32 %v2359, 1.442695
        %v2365 = vpow.pop %v2364
        %v2366 = vmul.f32 %v2360, 1.442695
        %v2367 = vpow.pop %v2366
        %v2368 = vmul.f32 %v2361, 1.442695
        %v2369 = vpow.pop %v2368
        %v2370 = vmul.f32 %v2362, 1.442695
        %v2371 = vpow.pop %v2370
        %v2372 = vmul.f32 %v2363, 1.442695
        %v2373 = vpow.pop %v2372
        %v2374 = vadd.f32 %v2365, 1.0
        %v2375 = vadd.f32 %v2367, 1.0
        %v2376 = vadd.f32 %v2369, 1.0
        %v2377 = vadd.f32 %v2371, 1.0
        %v2378 = vadd.f32 %v2373, 1.0
        %v2379 = vrcp.pop %v2374
        %v2380 = vmul.f32 %v2374, %v2379
        %v2381 = vsub.f32 1.0, %v2380
        %v2382 = vmul.f32 %v2379, %v2381
        %v2383 = vadd.f32 %v2379, %v2382
        %vm2384 = vweird.f32 %v2374
        %vm2385 = vweird.f32 %v2379
        %vm2386 = vmor %vm2384, %vm2385
        %v2387 = vsel %vm2386, %v2379, %v2383
        %v2388 = vand.u32 2147483647, %v2374
        %vm2389 = vcmp.eq.f32.partialorder %v2388, 8.507059e+37
        %v2390 = vand.u32 %v2374, 2147483648
        %v2391 = vor.u32 1.1754944e-38, %v2390
        %v2392 = vsel %vm2389, %v2391, %v2387
        %v2393 = vmul.f32 1.0, %v2392
        %v2394 = vrcp.pop %v2375
        %v2395 = vmul.f32 %v2375, %v2394
        %v2396 = vsub.f32 1.0, %v2395
        %v2397 = vmul.f32 %v2394, %v2396
        %v2398 = vadd.f32 %v2394, %v2397
        %vm2399 = vweird.f32 %v2375
        %vm2400 = vweird.f32 %v2394
        %vm2401 = vmor %vm2399, %vm2400
        %v2402 = vsel %vm2401, %v2394, %v2398
        %v2403 = vand.u32 2147483647, %v2375
        %vm2404 = vcmp.eq.f32.partialorder %v2403, 8.507059e+37
        %v2405 = vand.u32 %v2375, 2147483648
        %v2406 = vor.u32 1.1754944e-38, %v2405
        %v2407 = vsel %vm2404, %v2406, %v2402
        %v2408 = vmul.f32 1.0, %v2407
        %v2409 = vrcp.pop %v2376
        %v2410 = vmul.f32 %v2376, %v2409
        %v2411 = vsub.f32 1.0, %v2410
        %v2412 = vmul.f32 %v2409, %v2411
        %v2413 = vadd.f32 %v2409, %v2412
        %vm2414 = vweird.f32 %v2376
        %vm2415 = vweird.f32 %v2409
        %vm2416 = vmor %vm2414, %vm2415
        %v2417 = vsel %vm2416, %v2409, %v2413
        %v2418 = vand.u32 2147483647, %v2376
        %vm2419 = vcmp.eq.f32.partialorder %v2418, 8.507059e+37
        %v2420 = vand.u32 %v2376, 2147483648
        %v2421 = vor.u32 1.1754944e-38, %v2420
        %v2422 = vsel %vm2419, %v2421, %v2417
        %v2423 = vmul.f32 1.0, %v2422
        %v2424 = vrcp.pop %v2377
        %v2425 = vmul.f32 %v2377, %v2424
        %v2426 = vsub.f32 1.0, %v2425
        %v2427 = vmul.f32 %v2424, %v2426
        %v2428 = vadd.f32 %v2424, %v2427
        %vm2429 = vweird.f32 %v2377
        %vm2430 = vweird.f32 %v2424
        %vm2431 = vmor %vm2429, %vm2430
        %v2432 = vsel %vm2431, %v2424, %v2428
        %v2433 = vand.u32 2147483647, %v2377
        %vm2434 = vcmp.eq.f32.partialorder %v2433, 8.507059e+37
        %v2435 = vand.u32 %v2377, 2147483648
        %v2436 = vor.u32 1.1754944e-38, %v2435
        %v2437 = vsel %vm2434, %v2436, %v2432
        %v2438 = vmul.f32 1.0, %v2437
        %v2439 = vrcp.pop %v2378
        %v2440 = vmul.f32 %v2378, %v2439
        %v2441 = vsub.f32 1.0, %v2440
        %v2442 = vmul.f32 %v2439, %v2441
        %v2443 = vadd.f32 %v2439, %v2442
        %vm2444 = vweird.f32 %v2378
        %vm2445 = vweird.f32 %v2439
        %vm2446 = vmor %vm2444, %vm2445
        %v2447 = vsel %vm2446, %v2439, %v2443
        %v2448 = vand.u32 2147483647, %v2378
        %vm2449 = vcmp.eq.f32.partialorder %v2448, 8.507059e+37
        %v2450 = vand.u32 %v2378, 2147483648
        %v2451 = vor.u32 1.1754944e-38, %v2450
        %v2452 = vsel %vm2449, %v2451, %v2447
        %v2453 = vmul.f32 1.0, %v2452
        %v2454 = vmax.f32 %v2393, 1e-07
        %v2455 = vmax.f32 %v2408, 1e-07
        %v2456 = vmax.f32 %v2423, 1e-07
        %v2457 = vmax.f32 %v2438, 1e-07
        %v2458 = vmax.f32 %v2453, 1e-07
        %v2459 = vmin.f32 %v2454, 0.9999999
        %v2460 = vmin.f32 %v2455, 0.9999999
        %v2461 = vmin.f32 %v2456, 0.9999999
        %v2462 = vmin.f32 %v2457, 0.9999999
        %v2463 = vmin.f32 %v2458, 0.9999999
        %v2464 = vmul.f32 %v2459, -0.05
        %v2465 = vmul.f32 %v2460, -0.05
        %v2466 = vmul.f32 %v2461, -0.05
        %v2467 = vmul.f32 %v2462, -0.05
        %v2468 = vmul.f32 %v2463, -0.05
        %v2469 = vsub.f32 1.0, %v2459
        %v2470 = vsub.f32 1.0, %v2460
        %v2471 = vsub.f32 1.0, %v2461
        %v2472 = vsub.f32 1.0, %v2462
        %v2473 = vsub.f32 1.0, %v2463
        %v2474 = vlog2.pop %v2469
        %v2475 = vmul.f32 %v2474, 0.6931472
        %v2476 = vlog2.pop %v2470
        %v2477 = vmul.f32 %v2476, 0.6931472
        %v2478 = vlog2.pop %v2471
        %v2479 = vmul.f32 %v2478, 0.6931472
        %v2480 = vlog2.pop %v2472
        %v2481 = vmul.f32 %v2480, 0.6931472
        %v2482 = vlog2.pop %v2473
        %v2483 = vmul.f32 %v2482, 0.6931472
        %v2484 = vmul.f32 %v2464, %v2475
        %v2485 = vmul.f32 %v2465, %v2477
        %v2486 = vmul.f32 %v2466, %v2479
        %v2487 = vmul.f32 %v2467, %v2481
        %v2488 = vmul.f32 %v2468, %v2483
        %v2489 = vmul.f32 %v2484, %v2213
        %v2490 = vmul.f32 %v2485, %v2214
        %v2491 = vmul.f32 %v2486, %v2215
        %v2492 = vmul.f32 %v2487, %v2216
        %v2493 = vmul.f32 %v2488, %v2217
        %v2494 = vadd.f32 %v2489, %v2490
        %v2495 = vadd.f32 %v2494, %v2491
        %v2496 = vadd.f32 %v2495, %v2492
        %vm2497 = vcmask 1043456
        %v2498 = vsel %vm2497, %v2493, 0.0
        %v2499 = vadd.f32 %v2496, %v2498
        %2500 = vadd.xlane.f32.xlu0 %v2499
        %v2501 = vpop.xlane.xlu0 %2500
        %v2502 = vrot.slane %v2501, 4
        %v2503 = vadd.f32 %v2501, %v2502
        %v2504 = vrot.slane %v2503, 2
        %v2505 = vadd.f32 %v2503, %v2504
        %v2506 = vrot.slane %v2505, 1
        %v2507 = vadd.f32 %v2505, %v2506
        %s2508 = vtos %v2507
        %v2509 = vstv %s2508
        %v2510 = vadd.f32 %v2509, 0.0
        %2511 = vst [vmem:[%s190] sm:$0xff] %v2510
        %s2512 = sand.u32 %s95, 1
        %s2513 = scalar_lea.sflag [#allocation3], %s2512
        %s2514 = sand.u32 %s95, 1
        %s2515 = smul.addr %s2514, 8
        %s2516 = scalar_lea.vmem [#allocation7], %s2515
        // Predicated region
        $region48: #{tpu_custom_call.1} parent=31 // pred_check
          %p2517 = pneg %p105
        $region49: #{tpu_custom_call.1} parent=31 // pred_check_branch
          %2519 = sbr.rel (%p2517) target = $region51
        $region50: #{tpu_custom_call.1} parent=31 // pred_region
          %2521 = vsyncadd %s2513, 0
          %s2522 = smul.addr %s19, 8
          %s2523 = scalar_lea.hbm %s3, %s2522
          %s2525 = sshll.u32 %s2516, 4
          %s2526 = int_to_ptr.vmem [resolvable:$true] %s2525
          %s2527 = sshll.u32 %s2523, 4
          %s2528 = int_to_ptr.hbm [resolvable:$true] %s2527
          %2530 = dma.vmem_to_hbm [thread:$0]  %s2526, 128, %s2528, %s2513
        $region51: #{tpu_custom_call.1} parent=31 // pred_fallthru
          _
      $region32: #{tpu_custom_call.1} parent=5 // pred_fallthru
        _
      %p2531 = scmp.le.s32.totalorder 2, %s14
      // Predicated region
      $region52: #{tpu_custom_call.1} parent=5 // pred_check
        %p2532 = pneg %p2531
      $region53: #{tpu_custom_call.1} parent=5 // pred_check_branch
        %2534 = sbr.rel (%p2532) target = $region55
      $region54: #{tpu_custom_call.1} parent=5 // pred_region
        %s2535 = ssub.s32 %s14, 2
        // Predicated region
        $region56: #{tpu_custom_call.1} parent=54 // pred_check
          %p2536 = pneg %p111
        $region57: #{tpu_custom_call.1} parent=54 // pred_check_branch
          %2538 = sbr.rel (%p2536) target = $region59
        $region58: #{tpu_custom_call.1} parent=54 // pred_region
          %s2539 = sand.u32 %s96, 1
          %s2540 = scalar_lea.sflag [#allocation3], %s2539
          %s2541 = sand.u32 %s96, 1
          %s2542 = smul.addr %s2541, 8
          %s2543 = scalar_lea.vmem [#allocation7], %s2542
          %2545 = dma.done %s2540, 128
        $region59: #{tpu_custom_call.1} parent=54 // pred_fallthru
          _
      $region55: #{tpu_custom_call.1} parent=5 // pred_fallthru
        _
    $region6: #{tpu_custom_call.1} parent=1 // loop_footer
      %s18 = sadd.s32 1, %s14
    $region7: #{tpu_custom_call.1} parent=1 // loop_footer_branch
      %13 = sbr.rel target = $region3
    $region8: #{tpu_custom_call.1} parent=1 // loop_exit
      _
    %2546 = vsyncpa [#allocation3], 1
    %s2547 = scalar_lea.sflag [#allocation3], 1
    %2548 = vsyncpa %s2547, 1
    %2549 = vsyncpa [#allocation4], 1
    %s2550 = scalar_lea.sflag [#allocation4], 1
    %2551 = vsyncpa %s2550, 1
    %2552 = vsyncpa [#allocation6], 1

</llo_original>
